<compile_context>
chip_gen: v7x
topology: tpu7x:2x2x1
jax: 0.10.0
libtpu: 0.0.40
codegen_flags: <defaults>
</compile_context>

<pallas_src>
import functools

import jax
import jax.numpy as jnp
from jax.experimental import pallas as pl
from jax.experimental.pallas import tpu as pltpu

_HIGHEST = jax.lax.Precision.HIGHEST


def _distmult_center_kernel(n_set, batch, dim, nonlinear,
                            emb_ref, w_ref, b_ref, out_ref):
    """Single invocation: emb_ref (N*B, D), w_ref (D, 4D), b_ref (4, D)."""
    x = emb_ref[...]          # (N*B, D)
    w = w_ref[...]            # (D, 4D): column block k is w_k.T
    b = b_ref[...]            # (4, D)

    w1 = w[:, 0 * dim:1 * dim]
    w2 = w[:, 1 * dim:2 * dim]
    w3 = w[:, 2 * dim:3 * dim]
    w4 = w[:, 3 * dim:4 * dim]

    # layer 1: relu(x @ w1.T + b1)
    h = jnp.dot(x, w1, preferred_element_type=jnp.float32,
                precision=_HIGHEST) + b[0:1, :]
    h = jnp.maximum(h, 0.0)
    # layer 2: h @ w2.T + b2 (+ optional relu)
    h = jnp.dot(h, w2, preferred_element_type=jnp.float32,
                precision=_HIGHEST) + b[1:2, :]
    if nonlinear:
        h = jnp.maximum(h, 0.0)

    # max over the set axis: unrolled maximum over static (B, D) slices.
    agg = h[0:batch, :]
    for k in range(1, n_set):
        agg = jnp.maximum(agg, h[k * batch:(k + 1) * batch, :])

    # layer 3: relu(agg @ w3.T + b3)
    y = jnp.dot(agg, w3, preferred_element_type=jnp.float32,
                precision=_HIGHEST) + b[2:3, :]
    y = jnp.maximum(y, 0.0)
    # layer 4: y @ w4.T + b4
    y = jnp.dot(y, w4, preferred_element_type=jnp.float32,
                precision=_HIGHEST) + b[3:4, :]

    out_ref[...] = y.astype(out_ref.dtype)


def distmult_center_set(embeddings, layers, *, nonlinear=True):
    """embeddings: (N, B, D) f32; layers: (4*D + 4, D) f32 (the nn.Parameter)."""
    N, B, D = embeddings.shape

    # Fused weight slab: layers[:4D].T has shape (D, 4D) and its k-th column
    # block equals w_k.T, so x @ slab[:, kD:(k+1)D] == F.linear(x, w_k).
    w_slab = layers[:4 * D, :].T          # (D, 4D)
    b_slab = layers[4 * D:, :]            # (4, D)
    emb_2d = embeddings.reshape(N * B, D)

    kernel = functools.partial(_distmult_center_kernel, N, B, D, nonlinear)

    vmem = pltpu.MemorySpace.VMEM
    out = pl.pallas_call(
        kernel,
        out_shape=jax.ShapeDtypeStruct((B, D), jnp.float32),
        in_specs=[
            pl.BlockSpec(memory_space=vmem),   # embeddings (N*B, D)
            pl.BlockSpec(memory_space=vmem),   # weight slab (D, 4D)
            pl.BlockSpec(memory_space=vmem),   # bias slab (4, D)
        ],
        out_specs=pl.BlockSpec(memory_space=vmem),
    )(emb_2d, w_slab, b_slab)
    return out
    # TODO(synk): if B or D scale up (e.g. D >= 1024 on v7x), reintroduce a
    # "parallel" B-tile grid axis and lazily fetch the layer-3/4 weights.


def _reference(embeddings, layers, nonlinear=True):
    """Pure-JAX reference mirroring the PyTorch forward."""
    D = embeddings.shape[-1]
    w1, w2, w3, w4 = (layers[k * D:(k + 1) * D, :] for k in range(4))
    b1, b2, b3, b4 = (layers[4 * D + k, :] for k in range(4))
    dot = functools.partial(jnp.dot, precision=_HIGHEST)
    x = jax.nn.relu(dot(embeddings, w1.T) + b1)
    x = dot(x, w2.T) + b2
    if nonlinear:
        x = jax.nn.relu(x)
    x = jnp.max(x, axis=0)  # torch.max(x, dim=0)[0]
    x = jax.nn.relu(dot(x, w3.T) + b3)
    x = dot(x, w4.T) + b4
    return x


if __name__ == "__main__":
    dim = 128      # hidden dim D
    batch = 8      # B
    n_set = 4      # N (set size, aggregation axis)

    key = jax.random.PRNGKey(0)
    k_emb, k_w = jax.random.split(key)

    # Deterministic parameter init mimicking the module __init__:
    # layers is (4*dim + 4, dim); first 4*dim rows xavier_uniform_, bias rows zero.
    fan_in, fan_out = dim, 4 * dim
    bound = (6.0 / (fan_in + fan_out)) ** 0.5
    weights = jax.random.uniform(k_w, (4 * dim, dim), jnp.float32,
                                 minval=-bound, maxval=bound)
    layers = jnp.concatenate([weights, jnp.zeros((4, dim), jnp.float32)], axis=0)

    embeddings = jax.random.normal(k_emb, (n_set, batch, dim), jnp.float32)

    out = distmult_center_set(embeddings, layers, nonlinear=True)
    out = jax.block_until_ready(out)

    ref = _reference(embeddings, layers, nonlinear=True)
    assert out.shape == (batch, dim)
    assert jnp.allclose(out, ref, atol=1e-4, rtol=1e-4)

    print("KERNEL_OK")
</pallas_src>

<mosaic_0001>
module attributes {stable_mosaic.version = 11 : i64} {
  func.func @_distmult_center_kernel(%arg0: memref<32x128xf32, #tpu.memory_space<vmem>>, %arg1: memref<128x512xf32, #tpu.memory_space<vmem>>, %arg2: memref<4x128xf32, #tpu.memory_space<vmem>>, %arg3: memref<8x128xf32, #tpu.memory_space<vmem>>) attributes {dimension_semantics = [], scalar_prefetch = 0 : i64, scratch_operands = 0 : i64, tpu.core_type = #tpu.core_type<tc>} {
    %c0 = arith.constant 0 : index
    %c0_0 = arith.constant 0 : index
    %0 = vector.load %arg0[%c0, %c0_0] : memref<32x128xf32, #tpu.memory_space<vmem>>, vector<32x128xf32>
    %c0_1 = arith.constant 0 : index
    %c0_2 = arith.constant 0 : index
    %1 = vector.load %arg1[%c0_1, %c0_2] : memref<128x512xf32, #tpu.memory_space<vmem>>, vector<128x512xf32>
    %c0_3 = arith.constant 0 : index
    %c0_4 = arith.constant 0 : index
    %2 = vector.load %arg2[%c0_3, %c0_4] : memref<4x128xf32, #tpu.memory_space<vmem>>, vector<4x128xf32>
    %3 = vector.extract_strided_slice %1 {offsets = [0, 0], sizes = [128, 128], strides = [1, 1]} : vector<128x512xf32> to vector<128x128xf32>
    %4 = vector.extract_strided_slice %1 {offsets = [0, 128], sizes = [128, 128], strides = [1, 1]} : vector<128x512xf32> to vector<128x128xf32>
    %5 = vector.extract_strided_slice %1 {offsets = [0, 256], sizes = [128, 128], strides = [1, 1]} : vector<128x512xf32> to vector<128x128xf32>
    %6 = vector.extract_strided_slice %1 {offsets = [0, 384], sizes = [128, 128], strides = [1, 1]} : vector<128x512xf32> to vector<128x128xf32>
    %cst = arith.constant dense<0.000000e+00> : vector<32x128xf32>
    %7 = tpu.matmul %0, %3, %cst {dimension_numbers = #tpu.dot_dimension_numbers<[1], [0], [0], [1], [0, 0, 1, 1], [], []>, precision = #tpu.contract_precision<fp32>} : vector<32x128xf32>, vector<128x128xf32>, vector<32x128xf32> -> vector<32x128xf32>
    %8 = vector.extract_strided_slice %2 {offsets = [0, 0], sizes = [1, 128], strides = [1, 1]} : vector<4x128xf32> to vector<1x128xf32>
    %9 = vector.broadcast %8 : vector<1x128xf32> to vector<32x128xf32>
    %10 = arith.addf %7, %9 : vector<32x128xf32>
    %cst_5 = arith.constant 0.000000e+00 : f32
    %11 = vector.broadcast %cst_5 : f32 to vector<32x128xf32>
    %12 = arith.maximumf %10, %11 : vector<32x128xf32>
    %cst_6 = arith.constant dense<0.000000e+00> : vector<32x128xf32>
    %13 = tpu.matmul %12, %4, %cst_6 {dimension_numbers = #tpu.dot_dimension_numbers<[1], [0], [0], [1], [0, 0, 1, 1], [], []>, precision = #tpu.contract_precision<fp32>} : vector<32x128xf32>, vector<128x128xf32>, vector<32x128xf32> -> vector<32x128xf32>
    %14 = vector.extract_strided_slice %2 {offsets = [1, 0], sizes = [1, 128], strides = [1, 1]} : vector<4x128xf32> to vector<1x128xf32>
    %15 = vector.broadcast %14 : vector<1x128xf32> to vector<32x128xf32>
    %16 = arith.addf %13, %15 : vector<32x128xf32>
    %cst_7 = arith.constant 0.000000e+00 : f32
    %17 = vector.broadcast %cst_7 : f32 to vector<32x128xf32>
    %18 = arith.maximumf %16, %17 : vector<32x128xf32>
    %19 = vector.extract_strided_slice %18 {offsets = [0, 0], sizes = [8, 128], strides = [1, 1]} : vector<32x128xf32> to vector<8x128xf32>
    %20 = vector.extract_strided_slice %18 {offsets = [8, 0], sizes = [8, 128], strides = [1, 1]} : vector<32x128xf32> to vector<8x128xf32>
    %21 = arith.maximumf %19, %20 : vector<8x128xf32>
    %22 = vector.extract_strided_slice %18 {offsets = [16, 0], sizes = [8, 128], strides = [1, 1]} : vector<32x128xf32> to vector<8x128xf32>
    %23 = arith.maximumf %21, %22 : vector<8x128xf32>
    %24 = vector.extract_strided_slice %18 {offsets = [24, 0], sizes = [8, 128], strides = [1, 1]} : vector<32x128xf32> to vector<8x128xf32>
    %25 = arith.maximumf %23, %24 : vector<8x128xf32>
    %cst_8 = arith.constant dense<0.000000e+00> : vector<8x128xf32>
    %26 = tpu.matmul %25, %5, %cst_8 {dimension_numbers = #tpu.dot_dimension_numbers<[1], [0], [0], [1], [0, 0, 1, 1], [], []>, precision = #tpu.contract_precision<fp32>} : vector<8x128xf32>, vector<128x128xf32>, vector<8x128xf32> -> vector<8x128xf32>
    %27 = vector.extract_strided_slice %2 {offsets = [2, 0], sizes = [1, 128], strides = [1, 1]} : vector<4x128xf32> to vector<1x128xf32>
    %28 = vector.broadcast %27 : vector<1x128xf32> to vector<8x128xf32>
    %29 = arith.addf %26, %28 : vector<8x128xf32>
    %cst_9 = arith.constant 0.000000e+00 : f32
    %30 = vector.broadcast %cst_9 : f32 to vector<8x128xf32>
    %31 = arith.maximumf %29, %30 : vector<8x128xf32>
    %cst_10 = arith.constant dense<0.000000e+00> : vector<8x128xf32>
    %32 = tpu.matmul %31, %6, %cst_10 {dimension_numbers = #tpu.dot_dimension_numbers<[1], [0], [0], [1], [0, 0, 1, 1], [], []>, precision = #tpu.contract_precision<fp32>} : vector<8x128xf32>, vector<128x128xf32>, vector<8x128xf32> -> vector<8x128xf32>
    %33 = vector.extract_strided_slice %2 {offsets = [3, 0], sizes = [1, 128], strides = [1, 1]} : vector<4x128xf32> to vector<1x128xf32>
    %34 = vector.broadcast %33 : vector<1x128xf32> to vector<8x128xf32>
    %35 = arith.addf %32, %34 : vector<8x128xf32>
    %c0_11 = arith.constant 0 : index
    %c0_12 = arith.constant 0 : index
    %36 = vector.load %arg3[%c0_11, %c0_12] : memref<8x128xf32, #tpu.memory_space<vmem>>, vector<8x128xf32>
    tpu.vector_store %arg3[%c0_11, %c0_12], %35 {strides = array<i32>} : memref<8x128xf32, #tpu.memory_space<vmem>>, vector<8x128xf32>,
    return
  }
}

</mosaic_0001>

<llo_original>
// kernel: tpu_custom_call.1
$region0: #{tpu_custom_call.1}
  #allocation0 [shape = 'u32[]', space=smem, size = 0x4, offset = 0x4, fixed_abs, tag = 'smem constant byte address 0x4 - core index']
  #allocation1 [shape = 'u32[144,128]{1,0:T(1,128)}', space=vmem, size = 0x12000, scoped, tag = 'internal scratch']
  %s0 = inlined_call_operand.hbm [shape: f32[32,128], index: 0, kind: input, shape index: {}]
  %s1 = inlined_call_operand.hbm [shape: f32[128,512], index: 1, kind: input, shape index: {}]
  %s2 = inlined_call_operand.vmem [shape: f32[4,128], index: 2, kind: input, shape index: {}]
  %s3 = inlined_call_operand.hbm [shape: f32[8,128], index: 3, kind: output, shape index: {}]
  %s4 = sld [smem:[#allocation0]]
  $region30: #{tpu_custom_call.1} parent=0
    _
  %s6 = ssub.s32 1, %s4
  %s7 = scalar_select 0, %s6, %s4
  $region1: #{tpu_custom_call.1} parent=0
    #allocation2 [shape = 'u8[16384]{0}', space=vmem, size = 0x4000, scoped, tag = 'input window, operand 0, single buffered']
    #allocation3 [shape = 's32[1]{0}', space=sflag, size = 0x4, scoped, tag = 'scoped memory for tpu_custom_call.1']
    #allocation4 [shape = 's32[1]{0}', space=sflag, size = 0x4, scoped, tag = 'scoped memory for tpu_custom_call.1']
    #allocation5 [shape = 'u8[262144]{0}', space=vmem, size = 0x40000, scoped, tag = 'input window, operand 1, single buffered']
    #allocation6 [shape = 's32[1]{0}', space=sflag, size = 0x4, scoped, tag = 'scoped memory for tpu_custom_call.1']
    #allocation7 [shape = 'u8[4096]{0}', space=vmem, size = 0x1000, scoped, tag = 'output window, operand 0, single buffered']
    %8 = vsyncpa [#allocation3], 0
    %9 = vsyncpa [#allocation6], 0
    %10 = vsyncpa [#allocation4], 0
    // Predicated region
    $region2: #{tpu_custom_call.1} parent=1 // pred_check
      _
    $region3: #{tpu_custom_call.1} parent=1 // pred_check_branch
      %12 = sbr.rel (0) target = $region5
    $region4: #{tpu_custom_call.1} parent=1 // pred_region
      %s14 = ssub.s32 512, 512
      %15 = vsyncadd [#allocation3], %s14
      %s16 = sshll.u32 [#allocation2], 4
      %s17 = int_to_ptr.vmem [resolvable:$true] %s16
      %22 = dma.hbm_to_vmem [thread:$0]  %s0, 512, %s17, [#allocation3], 128, 128, 8
    $region5: #{tpu_custom_call.1} parent=1 // pred_fallthru
      _
    // Predicated region
    $region6: #{tpu_custom_call.1} parent=1 // pred_check
      _
    $region7: #{tpu_custom_call.1} parent=1 // pred_check_branch
      %24 = sbr.rel (0) target = $region9
    $region8: #{tpu_custom_call.1} parent=1 // pred_region
      %s26 = ssub.s32 8192, 8192
      %27 = vsyncadd [#allocation6], %s26
      %s28 = sshll.u32 [#allocation5], 4
      %s29 = int_to_ptr.vmem [resolvable:$true] %s28
      %34 = dma.hbm_to_vmem [thread:$0]  %s1, 8192, %s29, [#allocation6], 512, 512, 32
    $region9: #{tpu_custom_call.1} parent=1 // pred_fallthru
      _
    // Predicated region
    $region10: #{tpu_custom_call.1} parent=1 // pred_check
      _
    $region11: #{tpu_custom_call.1} parent=1 // pred_check_branch
      %36 = sbr.rel (0) target = $region13
    $region12: #{tpu_custom_call.1} parent=1 // pred_region
      _
    $region13: #{tpu_custom_call.1} parent=1 // pred_fallthru
      _
    // Predicated region
    $region14: #{tpu_custom_call.1} parent=1 // pred_check
      _
    $region15: #{tpu_custom_call.1} parent=1 // pred_check_branch
      %38 = sbr.rel (0) target = $region17
    $region16: #{tpu_custom_call.1} parent=1 // pred_region
      %39 = dma.done [#allocation3], 512
    $region17: #{tpu_custom_call.1} parent=1 // pred_fallthru
      _
    // Predicated region
    $region18: #{tpu_custom_call.1} parent=1 // pred_check
      _
    $region19: #{tpu_custom_call.1} parent=1 // pred_check_branch
      %41 = sbr.rel (0) target = $region21
    $region20: #{tpu_custom_call.1} parent=1 // pred_region
      %42 = dma.done [#allocation6], 8192
    $region21: #{tpu_custom_call.1} parent=1 // pred_fallthru
      _
    %v43 = vld [vmem:[#allocation2] sm:$0xff]
    %v44 = vld [vmem:[#allocation2 + $0x8] sm:$0xff]
    %v45 = vld [vmem:[#allocation2 + $0x10] sm:$0xff]
    %v46 = vld [vmem:[#allocation2 + $0x18] sm:$0xff]
    %v47 = vld [vmem:[#allocation5] sm:$0xff]
    %v48 = vld [vmem:[#allocation5 + $0x8] sm:$0xff]
    %v49 = vld [vmem:[#allocation5 + $0x10] sm:$0xff]
    %v50 = vld [vmem:[#allocation5 + $0x18] sm:$0xff]
    %v51 = vld [vmem:[#allocation5 + $0x20] sm:$0xff]
    %v52 = vld [vmem:[#allocation5 + $0x28] sm:$0xff]
    %v53 = vld [vmem:[#allocation5 + $0x30] sm:$0xff]
    %v54 = vld [vmem:[#allocation5 + $0x38] sm:$0xff]
    %v55 = vld [vmem:[#allocation5 + $0x40] sm:$0xff]
    %v56 = vld [vmem:[#allocation5 + $0x48] sm:$0xff]
    %v57 = vld [vmem:[#allocation5 + $0x50] sm:$0xff]
    %v58 = vld [vmem:[#allocation5 + $0x58] sm:$0xff]
    %v59 = vld [vmem:[#allocation5 + $0x60] sm:$0xff]
    %v60 = vld [vmem:[#allocation5 + $0x68] sm:$0xff]
    %v61 = vld [vmem:[#allocation5 + $0x70] sm:$0xff]
    %v62 = vld [vmem:[#allocation5 + $0x78] sm:$0xff]
    %v63 = vld [vmem:[#allocation5 + $0x80] sm:$0xff]
    %v64 = vld [vmem:[#allocation5 + $0x88] sm:$0xff]
    %v65 = vld [vmem:[#allocation5 + $0x90] sm:$0xff]
    %v66 = vld [vmem:[#allocation5 + $0x98] sm:$0xff]
    %v67 = vld [vmem:[#allocation5 + $0xa0] sm:$0xff]
    %v68 = vld [vmem:[#allocation5 + $0xa8] sm:$0xff]
    %v69 = vld [vmem:[#allocation5 + $0xb0] sm:$0xff]
    %v70 = vld [vmem:[#allocation5 + $0xb8] sm:$0xff]
    %v71 = vld [vmem:[#allocation5 + $0xc0] sm:$0xff]
    %v72 = vld [vmem:[#allocation5 + $0xc8] sm:$0xff]
    %v73 = vld [vmem:[#allocation5 + $0xd0] sm:$0xff]
    %v74 = vld [vmem:[#allocation5 + $0xd8] sm:$0xff]
    %v75 = vld [vmem:[#allocation5 + $0xe0] sm:$0xff]
    %v76 = vld [vmem:[#allocation5 + $0xe8] sm:$0xff]
    %v77 = vld [vmem:[#allocation5 + $0xf0] sm:$0xff]
    %v78 = vld [vmem:[#allocation5 + $0xf8] sm:$0xff]
    %v79 = vld [vmem:[#allocation5 + $0x100] sm:$0xff]
    %v80 = vld [vmem:[#allocation5 + $0x108] sm:$0xff]
    %v81 = vld [vmem:[#allocation5 + $0x110] sm:$0xff]
    %v82 = vld [vmem:[#allocation5 + $0x118] sm:$0xff]
    %v83 = vld [vmem:[#allocation5 + $0x120] sm:$0xff]
    %v84 = vld [vmem:[#allocation5 + $0x128] sm:$0xff]
    %v85 = vld [vmem:[#allocation5 + $0x130] sm:$0xff]
    %v86 = vld [vmem:[#allocation5 + $0x138] sm:$0xff]
    %v87 = vld [vmem:[#allocation5 + $0x140] sm:$0xff]
    %v88 = vld [vmem:[#allocation5 + $0x148] sm:$0xff]
    %v89 = vld [vmem:[#allocation5 + $0x150] sm:$0xff]
    %v90 = vld [vmem:[#allocation5 + $0x158] sm:$0xff]
    %v91 = vld [vmem:[#allocation5 + $0x160] sm:$0xff]
    %v92 = vld [vmem:[#allocation5 + $0x168] sm:$0xff]
    %v93 = vld [vmem:[#allocation5 + $0x170] sm:$0xff]
    %v94 = vld [vmem:[#allocation5 + $0x178] sm:$0xff]
    %v95 = vld [vmem:[#allocation5 + $0x180] sm:$0xff]
    %v96 = vld [vmem:[#allocation5 + $0x188] sm:$0xff]
    %v97 = vld [vmem:[#allocation5 + $0x190] sm:$0xff]
    %v98 = vld [vmem:[#allocation5 + $0x198] sm:$0xff]
    %v99 = vld [vmem:[#allocation5 + $0x1a0] sm:$0xff]
    %v100 = vld [vmem:[#allocation5 + $0x1a8] sm:$0xff]
    %v101 = vld [vmem:[#allocation5 + $0x1b0] sm:$0xff]
    %v102 = vld [vmem:[#allocation5 + $0x1b8] sm:$0xff]
    %v103 = vld [vmem:[#allocation5 + $0x1c0] sm:$0xff]
    %v104 = vld [vmem:[#allocation5 + $0x1c8] sm:$0xff]
    %v105 = vld [vmem:[#allocation5 + $0x1d0] sm:$0xff]
    %v106 = vld [vmem:[#allocation5 + $0x1d8] sm:$0xff]
    %v107 = vld [vmem:[#allocation5 + $0x1e0] sm:$0xff]
    %v108 = vld [vmem:[#allocation5 + $0x1e8] sm:$0xff]
    %v109 = vld [vmem:[#allocation5 + $0x1f0] sm:$0xff]
    %v110 = vld [vmem:[#allocation5 + $0x1f8] sm:$0xff]
    %v111 = vld [vmem:[%s2] sm:$0xf]
    %v112 = vlaneseq
    %v113 = vshrl.u32 %v112, 7
    %v114 = vsub.s32 0, %v113
    %v115 = vrot.slane %v111, %v114
    %116 = vmatprep.subr.mxu0 0.0
    %v117 = vand.u32 %v47, 4294901760
    %118 = vmatpush1.msra.mxu0 %v117
    %119 = vmatprep.subr.mxu0 0.0
    %v120 = vand.u32 %v51, 4294901760
    %121 = vmatpush1.msra.mxu0 %v120
    %122 = vmatprep.subr.mxu0 0.0
    %v123 = vand.u32 %v55, 4294901760
    %124 = vmatpush1.msra.mxu0 %v123
    %125 = vmatprep.subr.mxu0 0.0
    %v126 = vand.u32 %v59, 4294901760
    %127 = vmatpush1.msra.mxu0 %v126
    %128 = vmatprep.subr.mxu0 0.0
    %v129 = vand.u32 %v63, 4294901760
    %130 = vmatpush1.msra.mxu0 %v129
    %131 = vmatprep.subr.mxu0 0.0
    %v132 = vand.u32 %v67, 4294901760
    %133 = vmatpush1.msra.mxu0 %v132
    %134 = vmatprep.subr.mxu0 0.0
    %v135 = vand.u32 %v71, 4294901760
    %136 = vmatpush1.msra.mxu0 %v135
    %137 = vmatprep.subr.mxu0 0.0
    %v138 = vand.u32 %v75, 4294901760
    %139 = vmatpush1.msra.mxu0 %v138
    %140 = vmatprep.subr.mxu0 0.0
    %v141 = vand.u32 %v79, 4294901760
    %142 = vmatpush1.msra.mxu0 %v141
    %143 = vmatprep.subr.mxu0 0.0
    %v144 = vand.u32 %v83, 4294901760
    %145 = vmatpush1.msra.mxu0 %v144
    %146 = vmatprep.subr.mxu0 0.0
    %v147 = vand.u32 %v87, 4294901760
    %148 = vmatpush1.msra.mxu0 %v147
    %149 = vmatprep.subr.mxu0 0.0
    %v150 = vand.u32 %v91, 4294901760
    %151 = vmatpush1.msra.mxu0 %v150
    %152 = vmatprep.subr.mxu0 0.0
    %v153 = vand.u32 %v95, 4294901760
    %154 = vmatpush1.msra.mxu0 %v153
    %155 = vmatprep.subr.mxu0 0.0
    %v156 = vand.u32 %v99, 4294901760
    %157 = vmatpush1.msra.mxu0 %v156
    %158 = vmatprep.subr.mxu0 0.0
    %v159 = vand.u32 %v103, 4294901760
    %160 = vmatpush1.msra.mxu0 %v159
    %161 = vmatprep.subr.mxu0 0.0
    %v162 = vand.u32 %v107, 4294901760
    %163 = vmatpush1.msra.mxu0 %v162
    %164 = vmatprep.subr.mxu0 0.0
    %165 = vmatpush1.msra.mxu0 0.0
    %166 = vmatprep.subr.mxu0 0.0
    %167 = vmatpush1.msra.mxu0 0.0
    %168 = vmatprep.subr.mxu0 0.0
    %169 = vmatpush1.msra.mxu0 0.0
    %170 = vmatprep.subr.mxu0 0.0
    %171 = vmatpush1.msra.mxu0 0.0
    %172 = vmatprep.subr.mxu0 0.0
    %173 = vmatpush1.msra.mxu0 0.0
    %174 = vmatprep.subr.mxu0 0.0
    %175 = vmatpush1.msra.mxu0 0.0
    %176 = vmatprep.subr.mxu0 0.0
    %177 = vmatpush1.msra.mxu0 0.0
    %178 = vmatprep.subr.mxu0 0.0
    %179 = vmatpush1.msra.mxu0 0.0
    %180 = vmatprep.subr.mxu0 0.0
    %181 = vmatpush1.msra.mxu0 0.0
    %182 = vmatprep.subr.mxu0 0.0
    %183 = vmatpush1.msra.mxu0 0.0
    %184 = vmatprep.subr.mxu0 0.0
    %185 = vmatpush1.msra.mxu0 0.0
    %186 = vmatprep.subr.mxu0 0.0
    %187 = vmatpush1.msra.mxu0 0.0
    %188 = vmatprep.subr.mxu0 0.0
    %189 = vmatpush1.msra.mxu0 0.0
    %190 = vmatprep.subr.mxu0 0.0
    %191 = vmatpush1.msra.mxu0 0.0
    %192 = vmatprep.subr.mxu0 0.0
    %193 = vmatpush1.msra.mxu0 0.0
    %194 = vmatprep.subr.mxu0 0.0
    %195 = vmatpush1.msra.mxu0 0.0
    %196 = vmatprep.mubr.f32.mxu0 0.0
    %v197 = vand.u32 %v43, 4294901760
    %v198 = vsub.f32 %v43, %v197
    %v199 = vand.u32 %v198, 4294901760
    %v200 = vsub.f32 %v198, %v199
    %v201 = vand.u32 %v200, 4294901760
    %202 = vmatmul.mubr.f32.gmra.mrb[0].mxu0 %v201
    %v203 = vpop.f32.mrb[0].mxu0
    %v204 = vadd.f32 %v115, %v203
    %v205 = vpop.f32.mrb[0].mxu0
    %206 = vmatprep.mubr.f32.mxu0 0.0
    %v207 = vand.u32 %v44, 4294901760
    %v208 = vsub.f32 %v44, %v207
    %v209 = vand.u32 %v208, 4294901760
    %v210 = vsub.f32 %v208, %v209
    %v211 = vand.u32 %v210, 4294901760
    %212 = vmatmul.mubr.f32.gmra.mrb[0].mxu0 %v211
    %v213 = vpop.f32.mrb[0].mxu0
    %v214 = vadd.f32 %v115, %v213
    %v215 = vpop.f32.mrb[0].mxu0
    %216 = vmatprep.mubr.f32.mxu0 0.0
    %v217 = vand.u32 %v45, 4294901760
    %v218 = vsub.f32 %v45, %v217
    %v219 = vand.u32 %v218, 4294901760
    %v220 = vsub.f32 %v218, %v219
    %v221 = vand.u32 %v220, 4294901760
    %222 = vmatmul.mubr.f32.gmra.mrb[0].mxu0 %v221
    %v223 = vpop.f32.mrb[0].mxu0
    %v224 = vadd.f32 %v115, %v223
    %v225 = vpop.f32.mrb[0].mxu0
    %226 = vmatprep.mubr.f32.mxu0 0.0
    %v227 = vand.u32 %v46, 4294901760
    %v228 = vsub.f32 %v46, %v227
    %v229 = vand.u32 %v228, 4294901760
    %v230 = vsub.f32 %v228, %v229
    %v231 = vand.u32 %v230, 4294901760
    %232 = vmatmul.mubr.f32.gmra.mrb[0].mxu0 %v231
    %v233 = vpop.f32.mrb[0].mxu0
    %v234 = vadd.f32 %v115, %v233
    %v235 = vpop.f32.mrb[0].mxu0
    %236 = vdwg.mxu0
    %237 = vmatprep.subr.mxu0 0.0
    %v238 = vand.u32 %v47, 4294901760
    %v239 = vsub.f32 %v47, %v238
    %v240 = vand.u32 %v239, 4294901760
    %v241 = vsub.f32 %v239, %v240
    %v242 = vand.u32 %v241, 4294901760
    %243 = vmatpush1.msra.mxu0 %v242
    %244 = vmatprep.subr.mxu0 0.0
    %v245 = vand.u32 %v51, 4294901760
    %v246 = vsub.f32 %v51, %v245
    %v247 = vand.u32 %v246, 4294901760
    %v248 = vsub.f32 %v246, %v247
    %v249 = vand.u32 %v248, 4294901760
    %250 = vmatpush1.msra.mxu0 %v249
    %251 = vmatprep.subr.mxu0 0.0
    %v252 = vand.u32 %v55, 4294901760
    %v253 = vsub.f32 %v55, %v252
    %v254 = vand.u32 %v253, 4294901760
    %v255 = vsub.f32 %v253, %v254
    %v256 = vand.u32 %v255, 4294901760
    %257 = vmatpush1.msra.mxu0 %v256
    %258 = vmatprep.subr.mxu0 0.0
    %v259 = vand.u32 %v59, 4294901760
    %v260 = vsub.f32 %v59, %v259
    %v261 = vand.u32 %v260, 4294901760
    %v262 = vsub.f32 %v260, %v261
    %v263 = vand.u32 %v262, 4294901760
    %264 = vmatpush1.msra.mxu0 %v263
    %265 = vmatprep.subr.mxu0 0.0
    %v266 = vand.u32 %v63, 4294901760
    %v267 = vsub.f32 %v63, %v266
    %v268 = vand.u32 %v267, 4294901760
    %v269 = vsub.f32 %v267, %v268
    %v270 = vand.u32 %v269, 4294901760
    %271 = vmatpush1.msra.mxu0 %v270
    %272 = vmatprep.subr.mxu0 0.0
    %v273 = vand.u32 %v67, 4294901760
    %v274 = vsub.f32 %v67, %v273
    %v275 = vand.u32 %v274, 4294901760
    %v276 = vsub.f32 %v274, %v275
    %v277 = vand.u32 %v276, 4294901760
    %278 = vmatpush1.msra.mxu0 %v277
    %279 = vmatprep.subr.mxu0 0.0
    %v280 = vand.u32 %v71, 4294901760
    %v281 = vsub.f32 %v71, %v280
    %v282 = vand.u32 %v281, 4294901760
    %v283 = vsub.f32 %v281, %v282
    %v284 = vand.u32 %v283, 4294901760
    %285 = vmatpush1.msra.mxu0 %v284
    %286 = vmatprep.subr.mxu0 0.0
    %v287 = vand.u32 %v75, 4294901760
    %v288 = vsub.f32 %v75, %v287
    %v289 = vand.u32 %v288, 4294901760
    %v290 = vsub.f32 %v288, %v289
    %v291 = vand.u32 %v290, 4294901760
    %292 = vmatpush1.msra.mxu0 %v291
    %293 = vmatprep.subr.mxu0 0.0
    %v294 = vand.u32 %v79, 4294901760
    %v295 = vsub.f32 %v79, %v294
    %v296 = vand.u32 %v295, 4294901760
    %v297 = vsub.f32 %v295, %v296
    %v298 = vand.u32 %v297, 4294901760
    %299 = vmatpush1.msra.mxu0 %v298
    %300 = vmatprep.subr.mxu0 0.0
    %v301 = vand.u32 %v83, 4294901760
    %v302 = vsub.f32 %v83, %v301
    %v303 = vand.u32 %v302, 4294901760
    %v304 = vsub.f32 %v302, %v303
    %v305 = vand.u32 %v304, 4294901760
    %306 = vmatpush1.msra.mxu0 %v305
    %307 = vmatprep.subr.mxu0 0.0
    %v308 = vand.u32 %v87, 4294901760
    %v309 = vsub.f32 %v87, %v308
    %v310 = vand.u32 %v309, 4294901760
    %v311 = vsub.f32 %v309, %v310
    %v312 = vand.u32 %v311, 4294901760
    %313 = vmatpush1.msra.mxu0 %v312
    %314 = vmatprep.subr.mxu0 0.0
    %v315 = vand.u32 %v91, 4294901760
    %v316 = vsub.f32 %v91, %v315
    %v317 = vand.u32 %v316, 4294901760
    %v318 = vsub.f32 %v316, %v317
    %v319 = vand.u32 %v318, 4294901760
    %320 = vmatpush1.msra.mxu0 %v319
    %321 = vmatprep.subr.mxu0 0.0
    %v322 = vand.u32 %v95, 4294901760
    %v323 = vsub.f32 %v95, %v322
    %v324 = vand.u32 %v323, 4294901760
    %v325 = vsub.f32 %v323, %v324
    %v326 = vand.u32 %v325, 4294901760
    %327 = vmatpush1.msra.mxu0 %v326
    %328 = vmatprep.subr.mxu0 0.0
    %v329 = vand.u32 %v99, 4294901760
    %v330 = vsub.f32 %v99, %v329
    %v331 = vand.u32 %v330, 4294901760
    %v332 = vsub.f32 %v330, %v331
    %v333 = vand.u32 %v332, 4294901760
    %334 = vmatpush1.msra.mxu0 %v333
    %335 = vmatprep.subr.mxu0 0.0
    %v336 = vand.u32 %v103, 4294901760
    %v337 = vsub.f32 %v103, %v336
    %v338 = vand.u32 %v337, 4294901760
    %v339 = vsub.f32 %v337, %v338
    %v340 = vand.u32 %v339, 4294901760
    %341 = vmatpush1.msra.mxu0 %v340
    %342 = vmatprep.subr.mxu0 0.0
    %v343 = vand.u32 %v107, 4294901760
    %v344 = vsub.f32 %v107, %v343
    %v345 = vand.u32 %v344, 4294901760
    %v346 = vsub.f32 %v344, %v345
    %v347 = vand.u32 %v346, 4294901760
    %348 = vmatpush1.msra.mxu0 %v347
    %349 = vmatprep.subr.mxu0 0.0
    %350 = vmatpush1.msra.mxu0 0.0
    %351 = vmatprep.subr.mxu0 0.0
    %352 = vmatpush1.msra.mxu0 0.0
    %353 = vmatprep.subr.mxu0 0.0
    %354 = vmatpush1.msra.mxu0 0.0
    %355 = vmatprep.subr.mxu0 0.0
    %356 = vmatpush1.msra.mxu0 0.0
    %357 = vmatprep.subr.mxu0 0.0
    %358 = vmatpush1.msra.mxu0 0.0
    %359 = vmatprep.subr.mxu0 0.0
    %360 = vmatpush1.msra.mxu0 0.0
    %361 = vmatprep.subr.mxu0 0.0
    %362 = vmatpush1.msra.mxu0 0.0
    %363 = vmatprep.subr.mxu0 0.0
    %364 = vmatpush1.msra.mxu0 0.0
    %365 = vmatprep.subr.mxu0 0.0
    %366 = vmatpush1.msra.mxu0 0.0
    %367 = vmatprep.subr.mxu0 0.0
    %368 = vmatpush1.msra.mxu0 0.0
    %369 = vmatprep.subr.mxu0 0.0
    %370 = vmatpush1.msra.mxu0 0.0
    %371 = vmatprep.subr.mxu0 0.0
    %372 = vmatpush1.msra.mxu0 0.0
    %373 = vmatprep.subr.mxu0 0.0
    %374 = vmatpush1.msra.mxu0 0.0
    %375 = vmatprep.subr.mxu0 0.0
    %376 = vmatpush1.msra.mxu0 0.0
    %377 = vmatprep.subr.mxu0 0.0
    %378 = vmatpush1.msra.mxu0 0.0
    %379 = vmatprep.subr.mxu0 0.0
    %380 = vmatpush1.msra.mxu0 0.0
    %381 = vmatprep.mubr.f32.mxu0 0.0
    %v382 = vand.u32 %v43, 4294901760
    %383 = vmatmul.mubr.f32.gmra.mrb[0].mxu0 %v382
    %v384 = vpop.f32.mrb[0].mxu0
    %v385 = vadd.f32 %v204, %v384
    %v386 = vpop.f32.mrb[0].mxu0
    %387 = vmatprep.mubr.f32.mxu0 0.0
    %v388 = vand.u32 %v44, 4294901760
    %389 = vmatmul.mubr.f32.gmra.mrb[0].mxu0 %v388
    %v390 = vpop.f32.mrb[0].mxu0
    %v391 = vadd.f32 %v214, %v390
    %v392 = vpop.f32.mrb[0].mxu0
    %393 = vmatprep.mubr.f32.mxu0 0.0
    %v394 = vand.u32 %v45, 4294901760
    %395 = vmatmul.mubr.f32.gmra.mrb[0].mxu0 %v394
    %v396 = vpop.f32.mrb[0].mxu0
    %v397 = vadd.f32 %v224, %v396
    %v398 = vpop.f32.mrb[0].mxu0
    %399 = vmatprep.mubr.f32.mxu0 0.0
    %v400 = vand.u32 %v46, 4294901760
    %401 = vmatmul.mubr.f32.gmra.mrb[0].mxu0 %v400
    %v402 = vpop.f32.mrb[0].mxu0
    %v403 = vadd.f32 %v234, %v402
    %v404 = vpop.f32.mrb[0].mxu0
    %405 = vdwg.mxu0
    %406 = vmatprep.subr.mxu0 0.0
    %v407 = vand.u32 %v47, 4294901760
    %v408 = vsub.f32 %v47, %v407
    %409 = vmatpush1.msra.mxu0 %v408
    %410 = vmatprep.subr.mxu0 0.0
    %v411 = vand.u32 %v51, 4294901760
    %v412 = vsub.f32 %v51, %v411
    %413 = vmatpush1.msra.mxu0 %v412
    %414 = vmatprep.subr.mxu0 0.0
    %v415 = vand.u32 %v55, 4294901760
    %v416 = vsub.f32 %v55, %v415
    %417 = vmatpush1.msra.mxu0 %v416
    %418 = vmatprep.subr.mxu0 0.0
    %v419 = vand.u32 %v59, 4294901760
    %v420 = vsub.f32 %v59, %v419
    %421 = vmatpush1.msra.mxu0 %v420
    %422 = vmatprep.subr.mxu0 0.0
    %v423 = vand.u32 %v63, 4294901760
    %v424 = vsub.f32 %v63, %v423
    %425 = vmatpush1.msra.mxu0 %v424
    %426 = vmatprep.subr.mxu0 0.0
    %v427 = vand.u32 %v67, 4294901760
    %v428 = vsub.f32 %v67, %v427
    %429 = vmatpush1.msra.mxu0 %v428
    %430 = vmatprep.subr.mxu0 0.0
    %v431 = vand.u32 %v71, 4294901760
    %v432 = vsub.f32 %v71, %v431
    %433 = vmatpush1.msra.mxu0 %v432
    %434 = vmatprep.subr.mxu0 0.0
    %v435 = vand.u32 %v75, 4294901760
    %v436 = vsub.f32 %v75, %v435
    %437 = vmatpush1.msra.mxu0 %v436
    %438 = vmatprep.subr.mxu0 0.0
    %v439 = vand.u32 %v79, 4294901760
    %v440 = vsub.f32 %v79, %v439
    %441 = vmatpush1.msra.mxu0 %v440
    %442 = vmatprep.subr.mxu0 0.0
    %v443 = vand.u32 %v83, 4294901760
    %v444 = vsub.f32 %v83, %v443
    %445 = vmatpush1.msra.mxu0 %v444
    %446 = vmatprep.subr.mxu0 0.0
    %v447 = vand.u32 %v87, 4294901760
    %v448 = vsub.f32 %v87, %v447
    %449 = vmatpush1.msra.mxu0 %v448
    %450 = vmatprep.subr.mxu0 0.0
    %v451 = vand.u32 %v91, 4294901760
    %v452 = vsub.f32 %v91, %v451
    %453 = vmatpush1.msra.mxu0 %v452
    %454 = vmatprep.subr.mxu0 0.0
    %v455 = vand.u32 %v95, 4294901760
    %v456 = vsub.f32 %v95, %v455
    %457 = vmatpush1.msra.mxu0 %v456
    %458 = vmatprep.subr.mxu0 0.0
    %v459 = vand.u32 %v99, 4294901760
    %v460 = vsub.f32 %v99, %v459
    %461 = vmatpush1.msra.mxu0 %v460
    %462 = vmatprep.subr.mxu0 0.0
    %v463 = vand.u32 %v103, 4294901760
    %v464 = vsub.f32 %v103, %v463
    %465 = vmatpush1.msra.mxu0 %v464
    %466 = vmatprep.subr.mxu0 0.0
    %v467 = vand.u32 %v107, 4294901760
    %v468 = vsub.f32 %v107, %v467
    %469 = vmatpush1.msra.mxu0 %v468
    %470 = vmatprep.subr.mxu0 0.0
    %471 = vmatpush1.msra.mxu0 0.0
    %472 = vmatprep.subr.mxu0 0.0
    %473 = vmatpush1.msra.mxu0 0.0
    %474 = vmatprep.subr.mxu0 0.0
    %475 = vmatpush1.msra.mxu0 0.0
    %476 = vmatprep.subr.mxu0 0.0
    %477 = vmatpush1.msra.mxu0 0.0
    %478 = vmatprep.subr.mxu0 0.0
    %479 = vmatpush1.msra.mxu0 0.0
    %480 = vmatprep.subr.mxu0 0.0
    %481 = vmatpush1.msra.mxu0 0.0
    %482 = vmatprep.subr.mxu0 0.0
    %483 = vmatpush1.msra.mxu0 0.0
    %484 = vmatprep.subr.mxu0 0.0
    %485 = vmatpush1.msra.mxu0 0.0
    %486 = vmatprep.subr.mxu0 0.0
    %487 = vmatpush1.msra.mxu0 0.0
    %488 = vmatprep.subr.mxu0 0.0
    %489 = vmatpush1.msra.mxu0 0.0
    %490 = vmatprep.subr.mxu0 0.0
    %491 = vmatpush1.msra.mxu0 0.0
    %492 = vmatprep.subr.mxu0 0.0
    %493 = vmatpush1.msra.mxu0 0.0
    %494 = vmatprep.subr.mxu0 0.0
    %495 = vmatpush1.msra.mxu0 0.0
    %496 = vmatprep.subr.mxu0 0.0
    %497 = vmatpush1.msra.mxu0 0.0
    %498 = vmatprep.subr.mxu0 0.0
    %499 = vmatpush1.msra.mxu0 0.0
    %500 = vmatprep.subr.mxu0 0.0
    %501 = vmatpush1.msra.mxu0 0.0
    %502 = vmatprep.mubr.f32.mxu0 0.0
    %v503 = vand.u32 %v43, 4294901760
    %v504 = vsub.f32 %v43, %v503
    %505 = vmatmul.mubr.f32.gmra.mrb[0].mxu0 %v504
    %v506 = vpop.f32.mrb[0].mxu0
    %v507 = vadd.f32 %v385, %v506
    %v508 = vpop.f32.mrb[0].mxu0
    %509 = vmatprep.mubr.f32.mxu0 0.0
    %v510 = vand.u32 %v44, 4294901760
    %v511 = vsub.f32 %v44, %v510
    %512 = vmatmul.mubr.f32.gmra.mrb[0].mxu0 %v511
    %v513 = vpop.f32.mrb[0].mxu0
    %v514 = vadd.f32 %v391, %v513
    %v515 = vpop.f32.mrb[0].mxu0
    %516 = vmatprep.mubr.f32.mxu0 0.0
    %v517 = vand.u32 %v45, 4294901760
    %v518 = vsub.f32 %v45, %v517
    %519 = vmatmul.mubr.f32.gmra.mrb[0].mxu0 %v518
    %v520 = vpop.f32.mrb[0].mxu0
    %v521 = vadd.f32 %v397, %v520
    %v522 = vpop.f32.mrb[0].mxu0
    %523 = vmatprep.mubr.f32.mxu0 0.0
    %v524 = vand.u32 %v46, 4294901760
    %v525 = vsub.f32 %v46, %v524
    %526 = vmatmul.mubr.f32.gmra.mrb[0].mxu0 %v525
    %v527 = vpop.f32.mrb[0].mxu0
    %v528 = vadd.f32 %v403, %v527
    %v529 = vpop.f32.mrb[0].mxu0
    %530 = vdwg.mxu0
    %531 = vmatprep.subr.mxu0 0.0
    %v532 = vand.u32 %v47, 4294901760
    %533 = vmatpush1.msra.mxu0 %v532
    %534 = vmatprep.subr.mxu0 0.0
    %v535 = vand.u32 %v51, 4294901760
    %536 = vmatpush1.msra.mxu0 %v535
    %537 = vmatprep.subr.mxu0 0.0
    %v538 = vand.u32 %v55, 4294901760
    %539 = vmatpush1.msra.mxu0 %v538
    %540 = vmatprep.subr.mxu0 0.0
    %v541 = vand.u32 %v59, 4294901760
    %542 = vmatpush1.msra.mxu0 %v541
    %543 = vmatprep.subr.mxu0 0.0
    %v544 = vand.u32 %v63, 4294901760
    %545 = vmatpush1.msra.mxu0 %v544
    %546 = vmatprep.subr.mxu0 0.0
    %v547 = vand.u32 %v67, 4294901760
    %548 = vmatpush1.msra.mxu0 %v547
    %549 = vmatprep.subr.mxu0 0.0
    %v550 = vand.u32 %v71, 4294901760
    %551 = vmatpush1.msra.mxu0 %v550
    %552 = vmatprep.subr.mxu0 0.0
    %v553 = vand.u32 %v75, 4294901760
    %554 = vmatpush1.msra.mxu0 %v553
    %555 = vmatprep.subr.mxu0 0.0
    %v556 = vand.u32 %v79, 4294901760
    %557 = vmatpush1.msra.mxu0 %v556
    %558 = vmatprep.subr.mxu0 0.0
    %v559 = vand.u32 %v83, 4294901760
    %560 = vmatpush1.msra.mxu0 %v559
    %561 = vmatprep.subr.mxu0 0.0
    %v562 = vand.u32 %v87, 4294901760
    %563 = vmatpush1.msra.mxu0 %v562
    %564 = vmatprep.subr.mxu0 0.0
    %v565 = vand.u32 %v91, 4294901760
    %566 = vmatpush1.msra.mxu0 %v565
    %567 = vmatprep.subr.mxu0 0.0
    %v568 = vand.u32 %v95, 4294901760
    %569 = vmatpush1.msra.mxu0 %v568
    %570 = vmatprep.subr.mxu0 0.0
    %v571 = vand.u32 %v99, 4294901760
    %572 = vmatpush1.msra.mxu0 %v571
    %573 = vmatprep.subr.mxu0 0.0
    %v574 = vand.u32 %v103, 4294901760
    %575 = vmatpush1.msra.mxu0 %v574
    %576 = vmatprep.subr.mxu0 0.0
    %v577 = vand.u32 %v107, 4294901760
    %578 = vmatpush1.msra.mxu0 %v577
    %579 = vmatprep.subr.mxu0 0.0
    %580 = vmatpush1.msra.mxu0 0.0
    %581 = vmatprep.subr.mxu0 0.0
    %582 = vmatpush1.msra.mxu0 0.0
    %583 = vmatprep.subr.mxu0 0.0
    %584 = vmatpush1.msra.mxu0 0.0
    %585 = vmatprep.subr.mxu0 0.0
    %586 = vmatpush1.msra.mxu0 0.0
    %587 = vmatprep.subr.mxu0 0.0
    %588 = vmatpush1.msra.mxu0 0.0
    %589 = vmatprep.subr.mxu0 0.0
    %590 = vmatpush1.msra.mxu0 0.0
    %591 = vmatprep.subr.mxu0 0.0
    %592 = vmatpush1.msra.mxu0 0.0
    %593 = vmatprep.subr.mxu0 0.0
    %594 = vmatpush1.msra.mxu0 0.0
    %595 = vmatprep.subr.mxu0 0.0
    %596 = vmatpush1.msra.mxu0 0.0
    %597 = vmatprep.subr.mxu0 0.0
    %598 = vmatpush1.msra.mxu0 0.0
    %599 = vmatprep.subr.mxu0 0.0
    %600 = vmatpush1.msra.mxu0 0.0
    %601 = vmatprep.subr.mxu0 0.0
    %602 = vmatpush1.msra.mxu0 0.0
    %603 = vmatprep.subr.mxu0 0.0
    %604 = vmatpush1.msra.mxu0 0.0
    %605 = vmatprep.subr.mxu0 0.0
    %606 = vmatpush1.msra.mxu0 0.0
    %607 = vmatprep.subr.mxu0 0.0
    %608 = vmatpush1.msra.mxu0 0.0
    %609 = vmatprep.subr.mxu0 0.0
    %610 = vmatpush1.msra.mxu0 0.0
    %611 = vmatprep.mubr.f32.mxu0 0.0
    %v612 = vand.u32 %v43, 4294901760
    %v613 = vsub.f32 %v43, %v612
    %v614 = vand.u32 %v613, 4294901760
    %615 = vmatmul.mubr.f32.gmra.mrb[0].mxu0 %v614
    %v616 = vpop.f32.mrb[0].mxu0
    %v617 = vadd.f32 %v507, %v616
    %v618 = vpop.f32.mrb[0].mxu0
    %619 = vmatprep.mubr.f32.mxu0 0.0
    %v620 = vand.u32 %v44, 4294901760
    %v621 = vsub.f32 %v44, %v620
    %v622 = vand.u32 %v621, 4294901760
    %623 = vmatmul.mubr.f32.gmra.mrb[0].mxu0 %v622
    %v624 = vpop.f32.mrb[0].mxu0
    %v625 = vadd.f32 %v514, %v624
    %v626 = vpop.f32.mrb[0].mxu0
    %627 = vmatprep.mubr.f32.mxu0 0.0
    %v628 = vand.u32 %v45, 4294901760
    %v629 = vsub.f32 %v45, %v628
    %v630 = vand.u32 %v629, 4294901760
    %631 = vmatmul.mubr.f32.gmra.mrb[0].mxu0 %v630
    %v632 = vpop.f32.mrb[0].mxu0
    %v633 = vadd.f32 %v521, %v632
    %v634 = vpop.f32.mrb[0].mxu0
    %635 = vmatprep.mubr.f32.mxu0 0.0
    %v636 = vand.u32 %v46, 4294901760
    %v637 = vsub.f32 %v46, %v636
    %v638 = vand.u32 %v637, 4294901760
    %639 = vmatmul.mubr.f32.gmra.mrb[0].mxu0 %v638
    %v640 = vpop.f32.mrb[0].mxu0
    %v641 = vadd.f32 %v528, %v640
    %v642 = vpop.f32.mrb[0].mxu0
    %643 = vdwg.mxu0
    %644 = vmatprep.subr.mxu0 0.0
    %v645 = vand.u32 %v47, 4294901760
    %v646 = vsub.f32 %v47, %v645
    %v647 = vand.u32 %v646, 4294901760
    %648 = vmatpush1.msra.mxu0 %v647
    %649 = vmatprep.subr.mxu0 0.0
    %v650 = vand.u32 %v51, 4294901760
    %v651 = vsub.f32 %v51, %v650
    %v652 = vand.u32 %v651, 4294901760
    %653 = vmatpush1.msra.mxu0 %v652
    %654 = vmatprep.subr.mxu0 0.0
    %v655 = vand.u32 %v55, 4294901760
    %v656 = vsub.f32 %v55, %v655
    %v657 = vand.u32 %v656, 4294901760
    %658 = vmatpush1.msra.mxu0 %v657
    %659 = vmatprep.subr.mxu0 0.0
    %v660 = vand.u32 %v59, 4294901760
    %v661 = vsub.f32 %v59, %v660
    %v662 = vand.u32 %v661, 4294901760
    %663 = vmatpush1.msra.mxu0 %v662
    %664 = vmatprep.subr.mxu0 0.0
    %v665 = vand.u32 %v63, 4294901760
    %v666 = vsub.f32 %v63, %v665
    %v667 = vand.u32 %v666, 4294901760
    %668 = vmatpush1.msra.mxu0 %v667
    %669 = vmatprep.subr.mxu0 0.0
    %v670 = vand.u32 %v67, 4294901760
    %v671 = vsub.f32 %v67, %v670
    %v672 = vand.u32 %v671, 4294901760
    %673 = vmatpush1.msra.mxu0 %v672
    %674 = vmatprep.subr.mxu0 0.0
    %v675 = vand.u32 %v71, 4294901760
    %v676 = vsub.f32 %v71, %v675
    %v677 = vand.u32 %v676, 4294901760
    %678 = vmatpush1.msra.mxu0 %v677
    %679 = vmatprep.subr.mxu0 0.0
    %v680 = vand.u32 %v75, 4294901760
    %v681 = vsub.f32 %v75, %v680
    %v682 = vand.u32 %v681, 4294901760
    %683 = vmatpush1.msra.mxu0 %v682
    %684 = vmatprep.subr.mxu0 0.0
    %v685 = vand.u32 %v79, 4294901760
    %v686 = vsub.f32 %v79, %v685
    %v687 = vand.u32 %v686, 4294901760
    %688 = vmatpush1.msra.mxu0 %v687
    %689 = vmatprep.subr.mxu0 0.0
    %v690 = vand.u32 %v83, 4294901760
    %v691 = vsub.f32 %v83, %v690
    %v692 = vand.u32 %v691, 4294901760
    %693 = vmatpush1.msra.mxu0 %v692
    %694 = vmatprep.subr.mxu0 0.0
    %v695 = vand.u32 %v87, 4294901760
    %v696 = vsub.f32 %v87, %v695
    %v697 = vand.u32 %v696, 4294901760
    %698 = vmatpush1.msra.mxu0 %v697
    %699 = vmatprep.subr.mxu0 0.0
    %v700 = vand.u32 %v91, 4294901760
    %v701 = vsub.f32 %v91, %v700
    %v702 = vand.u32 %v701, 4294901760
    %703 = vmatpush1.msra.mxu0 %v702
    %704 = vmatprep.subr.mxu0 0.0
    %v705 = vand.u32 %v95, 4294901760
    %v706 = vsub.f32 %v95, %v705
    %v707 = vand.u32 %v706, 4294901760
    %708 = vmatpush1.msra.mxu0 %v707
    %709 = vmatprep.subr.mxu0 0.0
    %v710 = vand.u32 %v99, 4294901760
    %v711 = vsub.f32 %v99, %v710
    %v712 = vand.u32 %v711, 4294901760
    %713 = vmatpush1.msra.mxu0 %v712
    %714 = vmatprep.subr.mxu0 0.0
    %v715 = vand.u32 %v103, 4294901760
    %v716 = vsub.f32 %v103, %v715
    %v717 = vand.u32 %v716, 4294901760
    %718 = vmatpush1.msra.mxu0 %v717
    %719 = vmatprep.subr.mxu0 0.0
    %v720 = vand.u32 %v107, 4294901760
    %v721 = vsub.f32 %v107, %v720
    %v722 = vand.u32 %v721, 4294901760
    %723 = vmatpush1.msra.mxu0 %v722
    %724 = vmatprep.subr.mxu0 0.0
    %725 = vmatpush1.msra.mxu0 0.0
    %726 = vmatprep.subr.mxu0 0.0
    %727 = vmatpush1.msra.mxu0 0.0
    %728 = vmatprep.subr.mxu0 0.0
    %729 = vmatpush1.msra.mxu0 0.0
    %730 = vmatprep.subr.mxu0 0.0
    %731 = vmatpush1.msra.mxu0 0.0
    %732 = vmatprep.subr.mxu0 0.0
    %733 = vmatpush1.msra.mxu0 0.0
    %734 = vmatprep.subr.mxu0 0.0
    %735 = vmatpush1.msra.mxu0 0.0
    %736 = vmatprep.subr.mxu0 0.0
    %737 = vmatpush1.msra.mxu0 0.0
    %738 = vmatprep.subr.mxu0 0.0
    %739 = vmatpush1.msra.mxu0 0.0
    %740 = vmatprep.subr.mxu0 0.0
    %741 = vmatpush1.msra.mxu0 0.0
    %742 = vmatprep.subr.mxu0 0.0
    %743 = vmatpush1.msra.mxu0 0.0
    %744 = vmatprep.subr.mxu0 0.0
    %745 = vmatpush1.msra.mxu0 0.0
    %746 = vmatprep.subr.mxu0 0.0
    %747 = vmatpush1.msra.mxu0 0.0
    %748 = vmatprep.subr.mxu0 0.0
    %749 = vmatpush1.msra.mxu0 0.0
    %750 = vmatprep.subr.mxu0 0.0
    %751 = vmatpush1.msra.mxu0 0.0
    %752 = vmatprep.subr.mxu0 0.0
    %753 = vmatpush1.msra.mxu0 0.0
    %754 = vmatprep.subr.mxu0 0.0
    %755 = vmatpush1.msra.mxu0 0.0
    %756 = vmatprep.mubr.f32.mxu0 0.0
    %v757 = vand.u32 %v43, 4294901760
    %758 = vmatmul.mubr.f32.gmra.mrb[0].mxu0 %v757
    %v759 = vpop.f32.mrb[0].mxu0
    %v760 = vadd.f32 %v617, %v759
    %v761 = vpop.f32.mrb[0].mxu0
    %762 = vmatprep.mubr.f32.mxu0 0.0
    %v763 = vand.u32 %v44, 4294901760
    %764 = vmatmul.mubr.f32.gmra.mrb[0].mxu0 %v763
    %v765 = vpop.f32.mrb[0].mxu0
    %v766 = vadd.f32 %v625, %v765
    %v767 = vpop.f32.mrb[0].mxu0
    %768 = vmatprep.mubr.f32.mxu0 0.0
    %v769 = vand.u32 %v45, 4294901760
    %770 = vmatmul.mubr.f32.gmra.mrb[0].mxu0 %v769
    %v771 = vpop.f32.mrb[0].mxu0
    %v772 = vadd.f32 %v633, %v771
    %v773 = vpop.f32.mrb[0].mxu0
    %774 = vmatprep.mubr.f32.mxu0 0.0
    %v775 = vand.u32 %v46, 4294901760
    %776 = vmatmul.mubr.f32.gmra.mrb[0].mxu0 %v775
    %v777 = vpop.f32.mrb[0].mxu0
    %v778 = vadd.f32 %v641, %v777
    %v779 = vpop.f32.mrb[0].mxu0
    %780 = vdwg.mxu0
    %781 = vmatprep.subr.mxu0 0.0
    %v782 = vand.u32 %v47, 4294901760
    %783 = vmatpush1.msra.mxu0 %v782
    %784 = vmatprep.subr.mxu0 0.0
    %v785 = vand.u32 %v51, 4294901760
    %786 = vmatpush1.msra.mxu0 %v785
    %787 = vmatprep.subr.mxu0 0.0
    %v788 = vand.u32 %v55, 4294901760
    %789 = vmatpush1.msra.mxu0 %v788
    %790 = vmatprep.subr.mxu0 0.0
    %v791 = vand.u32 %v59, 4294901760
    %792 = vmatpush1.msra.mxu0 %v791
    %793 = vmatprep.subr.mxu0 0.0
    %v794 = vand.u32 %v63, 4294901760
    %795 = vmatpush1.msra.mxu0 %v794
    %796 = vmatprep.subr.mxu0 0.0
    %v797 = vand.u32 %v67, 4294901760
    %798 = vmatpush1.msra.mxu0 %v797
    %799 = vmatprep.subr.mxu0 0.0
    %v800 = vand.u32 %v71, 4294901760
    %801 = vmatpush1.msra.mxu0 %v800
    %802 = vmatprep.subr.mxu0 0.0
    %v803 = vand.u32 %v75, 4294901760
    %804 = vmatpush1.msra.mxu0 %v803
    %805 = vmatprep.subr.mxu0 0.0
    %v806 = vand.u32 %v79, 4294901760
    %807 = vmatpush1.msra.mxu0 %v806
    %808 = vmatprep.subr.mxu0 0.0
    %v809 = vand.u32 %v83, 4294901760
    %810 = vmatpush1.msra.mxu0 %v809
    %811 = vmatprep.subr.mxu0 0.0
    %v812 = vand.u32 %v87, 4294901760
    %813 = vmatpush1.msra.mxu0 %v812
    %814 = vmatprep.subr.mxu0 0.0
    %v815 = vand.u32 %v91, 4294901760
    %816 = vmatpush1.msra.mxu0 %v815
    %817 = vmatprep.subr.mxu0 0.0
    %v818 = vand.u32 %v95, 4294901760
    %819 = vmatpush1.msra.mxu0 %v818
    %820 = vmatprep.subr.mxu0 0.0
    %v821 = vand.u32 %v99, 4294901760
    %822 = vmatpush1.msra.mxu0 %v821
    %823 = vmatprep.subr.mxu0 0.0
    %v824 = vand.u32 %v103, 4294901760
    %825 = vmatpush1.msra.mxu0 %v824
    %826 = vmatprep.subr.mxu0 0.0
    %v827 = vand.u32 %v107, 4294901760
    %828 = vmatpush1.msra.mxu0 %v827
    %829 = vmatprep.subr.mxu0 0.0
    %830 = vmatpush1.msra.mxu0 0.0
    %831 = vmatprep.subr.mxu0 0.0
    %832 = vmatpush1.msra.mxu0 0.0
    %833 = vmatprep.subr.mxu0 0.0
    %834 = vmatpush1.msra.mxu0 0.0
    %835 = vmatprep.subr.mxu0 0.0
    %836 = vmatpush1.msra.mxu0 0.0
    %837 = vmatprep.subr.mxu0 0.0
    %838 = vmatpush1.msra.mxu0 0.0
    %839 = vmatprep.subr.mxu0 0.0
    %840 = vmatpush1.msra.mxu0 0.0
    %841 = vmatprep.subr.mxu0 0.0
    %842 = vmatpush1.msra.mxu0 0.0
    %843 = vmatprep.subr.mxu0 0.0
    %844 = vmatpush1.msra.mxu0 0.0
    %845 = vmatprep.subr.mxu0 0.0
    %846 = vmatpush1.msra.mxu0 0.0
    %847 = vmatprep.subr.mxu0 0.0
    %848 = vmatpush1.msra.mxu0 0.0
    %849 = vmatprep.subr.mxu0 0.0
    %850 = vmatpush1.msra.mxu0 0.0
    %851 = vmatprep.subr.mxu0 0.0
    %852 = vmatpush1.msra.mxu0 0.0
    %853 = vmatprep.subr.mxu0 0.0
    %854 = vmatpush1.msra.mxu0 0.0
    %855 = vmatprep.subr.mxu0 0.0
    %856 = vmatpush1.msra.mxu0 0.0
    %857 = vmatprep.subr.mxu0 0.0
    %858 = vmatpush1.msra.mxu0 0.0
    %859 = vmatprep.subr.mxu0 0.0
    %860 = vmatpush1.msra.mxu0 0.0
    %861 = vmatprep.mubr.f32.mxu0 0.0
    %v862 = vand.u32 %v43, 4294901760
    %863 = vmatmul.mubr.f32.gmra.mrb[0].mxu0 %v862
    %v864 = vpop.f32.mrb[0].mxu0
    %v865 = vadd.f32 %v760, %v864
    %v866 = vpop.f32.mrb[0].mxu0
    %867 = vmatprep.mubr.f32.mxu0 0.0
    %v868 = vand.u32 %v44, 4294901760
    %869 = vmatmul.mubr.f32.gmra.mrb[0].mxu0 %v868
    %v870 = vpop.f32.mrb[0].mxu0
    %v871 = vadd.f32 %v766, %v870
    %v872 = vpop.f32.mrb[0].mxu0
    %873 = vmatprep.mubr.f32.mxu0 0.0
    %v874 = vand.u32 %v45, 4294901760
    %875 = vmatmul.mubr.f32.gmra.mrb[0].mxu0 %v874
    %v876 = vpop.f32.mrb[0].mxu0
    %v877 = vadd.f32 %v772, %v876
    %v878 = vpop.f32.mrb[0].mxu0
    %879 = vmatprep.mubr.f32.mxu0 0.0
    %v880 = vand.u32 %v46, 4294901760
    %881 = vmatmul.mubr.f32.gmra.mrb[0].mxu0 %v880
    %v882 = vpop.f32.mrb[0].mxu0
    %v883 = vadd.f32 %v778, %v882
    %v884 = vpop.f32.mrb[0].mxu0
    %885 = vdwg.mxu0
    %v886 = vmax.f32 %v865, 0.0
    %v887 = vmax.f32 %v871, 0.0
    %v888 = vmax.f32 %v877, 0.0
    %v889 = vmax.f32 %v883, 0.0
    %v890 = vlaneseq
    %v891 = vshrl.u32 %v890, 7
    %v892 = vsub.s32 1, %v891
    %v893 = vrot.slane %v111, %v892
    %894 = vmatprep.subr.mxu0 0.0
    %v895 = vand.u32 %v48, 4294901760
    %896 = vmatpush1.msra.mxu0 %v895
    %897 = vmatprep.subr.mxu0 0.0
    %v898 = vand.u32 %v52, 4294901760
    %899 = vmatpush1.msra.mxu0 %v898
    %900 = vmatprep.subr.mxu0 0.0
    %v901 = vand.u32 %v56, 4294901760
    %902 = vmatpush1.msra.mxu0 %v901
    %903 = vmatprep.subr.mxu0 0.0
    %v904 = vand.u32 %v60, 4294901760
    %905 = vmatpush1.msra.mxu0 %v904
    %906 = vmatprep.subr.mxu0 0.0
    %v907 = vand.u32 %v64, 4294901760
    %908 = vmatpush1.msra.mxu0 %v907
    %909 = vmatprep.subr.mxu0 0.0
    %v910 = vand.u32 %v68, 4294901760
    %911 = vmatpush1.msra.mxu0 %v910
    %912 = vmatprep.subr.mxu0 0.0
    %v913 = vand.u32 %v72, 4294901760
    %914 = vmatpush1.msra.mxu0 %v913
    %915 = vmatprep.subr.mxu0 0.0
    %v916 = vand.u32 %v76, 4294901760
    %917 = vmatpush1.msra.mxu0 %v916
    %918 = vmatprep.subr.mxu0 0.0
    %v919 = vand.u32 %v80, 4294901760
    %920 = vmatpush1.msra.mxu0 %v919
    %921 = vmatprep.subr.mxu0 0.0
    %v922 = vand.u32 %v84, 4294901760
    %923 = vmatpush1.msra.mxu0 %v922
    %924 = vmatprep.subr.mxu0 0.0
    %v925 = vand.u32 %v88, 4294901760
    %926 = vmatpush1.msra.mxu0 %v925
    %927 = vmatprep.subr.mxu0 0.0
    %v928 = vand.u32 %v92, 4294901760
    %929 = vmatpush1.msra.mxu0 %v928
    %930 = vmatprep.subr.mxu0 0.0
    %v931 = vand.u32 %v96, 4294901760
    %932 = vmatpush1.msra.mxu0 %v931
    %933 = vmatprep.subr.mxu0 0.0
    %v934 = vand.u32 %v100, 4294901760
    %935 = vmatpush1.msra.mxu0 %v934
    %936 = vmatprep.subr.mxu0 0.0
    %v937 = vand.u32 %v104, 4294901760
    %938 = vmatpush1.msra.mxu0 %v937
    %939 = vmatprep.subr.mxu0 0.0
    %v940 = vand.u32 %v108, 4294901760
    %941 = vmatpush1.msra.mxu0 %v940
    %942 = vmatprep.subr.mxu0 0.0
    %943 = vmatpush1.msra.mxu0 0.0
    %944 = vmatprep.subr.mxu0 0.0
    %945 = vmatpush1.msra.mxu0 0.0
    %946 = vmatprep.subr.mxu0 0.0
    %947 = vmatpush1.msra.mxu0 0.0
    %948 = vmatprep.subr.mxu0 0.0
    %949 = vmatpush1.msra.mxu0 0.0
    %950 = vmatprep.subr.mxu0 0.0
    %951 = vmatpush1.msra.mxu0 0.0
    %952 = vmatprep.subr.mxu0 0.0
    %953 = vmatpush1.msra.mxu0 0.0
    %954 = vmatprep.subr.mxu0 0.0
    %955 = vmatpush1.msra.mxu0 0.0
    %956 = vmatprep.subr.mxu0 0.0
    %957 = vmatpush1.msra.mxu0 0.0
    %958 = vmatprep.subr.mxu0 0.0
    %959 = vmatpush1.msra.mxu0 0.0
    %960 = vmatprep.subr.mxu0 0.0
    %961 = vmatpush1.msra.mxu0 0.0
    %962 = vmatprep.subr.mxu0 0.0
    %963 = vmatpush1.msra.mxu0 0.0
    %964 = vmatprep.subr.mxu0 0.0
    %965 = vmatpush1.msra.mxu0 0.0
    %966 = vmatprep.subr.mxu0 0.0
    %967 = vmatpush1.msra.mxu0 0.0
    %968 = vmatprep.subr.mxu0 0.0
    %969 = vmatpush1.msra.mxu0 0.0
    %970 = vmatprep.subr.mxu0 0.0
    %971 = vmatpush1.msra.mxu0 0.0
    %972 = vmatprep.subr.mxu0 0.0
    %973 = vmatpush1.msra.mxu0 0.0
    %974 = vmatprep.mubr.f32.mxu0 0.0
    %v975 = vand.u32 %v886, 4294901760
    %v976 = vsub.f32 %v886, %v975
    %v977 = vand.u32 %v976, 4294901760
    %v978 = vsub.f32 %v976, %v977
    %v979 = vand.u32 %v978, 4294901760
    %980 = vmatmul.mubr.f32.gmra.mrb[0].mxu0 %v979
    %v981 = vpop.f32.mrb[0].mxu0
    %v982 = vadd.f32 %v893, %v981
    %v983 = vpop.f32.mrb[0].mxu0
    %984 = vmatprep.mubr.f32.mxu0 0.0
    %v985 = vand.u32 %v887, 4294901760
    %v986 = vsub.f32 %v887, %v985
    %v987 = vand.u32 %v986, 4294901760
    %v988 = vsub.f32 %v986, %v987
    %v989 = vand.u32 %v988, 4294901760
    %990 = vmatmul.mubr.f32.gmra.mrb[0].mxu0 %v989
    %v991 = vpop.f32.mrb[0].mxu0
    %v992 = vadd.f32 %v893, %v991
    %v993 = vpop.f32.mrb[0].mxu0
    %994 = vmatprep.mubr.f32.mxu0 0.0
    %v995 = vand.u32 %v888, 4294901760
    %v996 = vsub.f32 %v888, %v995
    %v997 = vand.u32 %v996, 4294901760
    %v998 = vsub.f32 %v996, %v997
    %v999 = vand.u32 %v998, 4294901760
    %1000 = vmatmul.mubr.f32.gmra.mrb[0].mxu0 %v999
    %v1001 = vpop.f32.mrb[0].mxu0
    %v1002 = vadd.f32 %v893, %v1001
    %v1003 = vpop.f32.mrb[0].mxu0
    %1004 = vmatprep.mubr.f32.mxu0 0.0
    %v1005 = vand.u32 %v889, 4294901760
    %v1006 = vsub.f32 %v889, %v1005
    %v1007 = vand.u32 %v1006, 4294901760
    %v1008 = vsub.f32 %v1006, %v1007
    %v1009 = vand.u32 %v1008, 4294901760
    %1010 = vmatmul.mubr.f32.gmra.mrb[0].mxu0 %v1009
    %v1011 = vpop.f32.mrb[0].mxu0
    %v1012 = vadd.f32 %v893, %v1011
    %v1013 = vpop.f32.mrb[0].mxu0
    %1014 = vdwg.mxu0
    %1015 = vmatprep.subr.mxu0 0.0
    %v1016 = vand.u32 %v48, 4294901760
    %v1017 = vsub.f32 %v48, %v1016
    %v1018 = vand.u32 %v1017, 4294901760
    %v1019 = vsub.f32 %v1017, %v1018
    %v1020 = vand.u32 %v1019, 4294901760
    %1021 = vmatpush1.msra.mxu0 %v1020
    %1022 = vmatprep.subr.mxu0 0.0
    %v1023 = vand.u32 %v52, 4294901760
    %v1024 = vsub.f32 %v52, %v1023
    %v1025 = vand.u32 %v1024, 4294901760
    %v1026 = vsub.f32 %v1024, %v1025
    %v1027 = vand.u32 %v1026, 4294901760
    %1028 = vmatpush1.msra.mxu0 %v1027
    %1029 = vmatprep.subr.mxu0 0.0
    %v1030 = vand.u32 %v56, 4294901760
    %v1031 = vsub.f32 %v56, %v1030
    %v1032 = vand.u32 %v1031, 4294901760
    %v1033 = vsub.f32 %v1031, %v1032
    %v1034 = vand.u32 %v1033, 4294901760
    %1035 = vmatpush1.msra.mxu0 %v1034
    %1036 = vmatprep.subr.mxu0 0.0
    %v1037 = vand.u32 %v60, 4294901760
    %v1038 = vsub.f32 %v60, %v1037
    %v1039 = vand.u32 %v1038, 4294901760
    %v1040 = vsub.f32 %v1038, %v1039
    %v1041 = vand.u32 %v1040, 4294901760
    %1042 = vmatpush1.msra.mxu0 %v1041
    %1043 = vmatprep.subr.mxu0 0.0
    %v1044 = vand.u32 %v64, 4294901760
    %v1045 = vsub.f32 %v64, %v1044
    %v1046 = vand.u32 %v1045, 4294901760
    %v1047 = vsub.f32 %v1045, %v1046
    %v1048 = vand.u32 %v1047, 4294901760
    %1049 = vmatpush1.msra.mxu0 %v1048
    %1050 = vmatprep.subr.mxu0 0.0
    %v1051 = vand.u32 %v68, 4294901760
    %v1052 = vsub.f32 %v68, %v1051
    %v1053 = vand.u32 %v1052, 4294901760
    %v1054 = vsub.f32 %v1052, %v1053
    %v1055 = vand.u32 %v1054, 4294901760
    %1056 = vmatpush1.msra.mxu0 %v1055
    %1057 = vmatprep.subr.mxu0 0.0
    %v1058 = vand.u32 %v72, 4294901760
    %v1059 = vsub.f32 %v72, %v1058
    %v1060 = vand.u32 %v1059, 4294901760
    %v1061 = vsub.f32 %v1059, %v1060
    %v1062 = vand.u32 %v1061, 4294901760
    %1063 = vmatpush1.msra.mxu0 %v1062
    %1064 = vmatprep.subr.mxu0 0.0
    %v1065 = vand.u32 %v76, 4294901760
    %v1066 = vsub.f32 %v76, %v1065
    %v1067 = vand.u32 %v1066, 4294901760
    %v1068 = vsub.f32 %v1066, %v1067
    %v1069 = vand.u32 %v1068, 4294901760
    %1070 = vmatpush1.msra.mxu0 %v1069
    %1071 = vmatprep.subr.mxu0 0.0
    %v1072 = vand.u32 %v80, 4294901760
    %v1073 = vsub.f32 %v80, %v1072
    %v1074 = vand.u32 %v1073, 4294901760
    %v1075 = vsub.f32 %v1073, %v1074
    %v1076 = vand.u32 %v1075, 4294901760
    %1077 = vmatpush1.msra.mxu0 %v1076
    %1078 = vmatprep.subr.mxu0 0.0
    %v1079 = vand.u32 %v84, 4294901760
    %v1080 = vsub.f32 %v84, %v1079
    %v1081 = vand.u32 %v1080, 4294901760
    %v1082 = vsub.f32 %v1080, %v1081
    %v1083 = vand.u32 %v1082, 4294901760
    %1084 = vmatpush1.msra.mxu0 %v1083
    %1085 = vmatprep.subr.mxu0 0.0
    %v1086 = vand.u32 %v88, 4294901760
    %v1087 = vsub.f32 %v88, %v1086
    %v1088 = vand.u32 %v1087, 4294901760
    %v1089 = vsub.f32 %v1087, %v1088
    %v1090 = vand.u32 %v1089, 4294901760
    %1091 = vmatpush1.msra.mxu0 %v1090
    %1092 = vmatprep.subr.mxu0 0.0
    %v1093 = vand.u32 %v92, 4294901760
    %v1094 = vsub.f32 %v92, %v1093
    %v1095 = vand.u32 %v1094, 4294901760
    %v1096 = vsub.f32 %v1094, %v1095
    %v1097 = vand.u32 %v1096, 4294901760
    %1098 = vmatpush1.msra.mxu0 %v1097
    %1099 = vmatprep.subr.mxu0 0.0
    %v1100 = vand.u32 %v96, 4294901760
    %v1101 = vsub.f32 %v96, %v1100
    %v1102 = vand.u32 %v1101, 4294901760
    %v1103 = vsub.f32 %v1101, %v1102
    %v1104 = vand.u32 %v1103, 4294901760
    %1105 = vmatpush1.msra.mxu0 %v1104
    %1106 = vmatprep.subr.mxu0 0.0
    %v1107 = vand.u32 %v100, 4294901760
    %v1108 = vsub.f32 %v100, %v1107
    %v1109 = vand.u32 %v1108, 4294901760
    %v1110 = vsub.f32 %v1108, %v1109
    %v1111 = vand.u32 %v1110, 4294901760
    %1112 = vmatpush1.msra.mxu0 %v1111
    %1113 = vmatprep.subr.mxu0 0.0
    %v1114 = vand.u32 %v104, 4294901760
    %v1115 = vsub.f32 %v104, %v1114
    %v1116 = vand.u32 %v1115, 4294901760
    %v1117 = vsub.f32 %v1115, %v1116
    %v1118 = vand.u32 %v1117, 4294901760
    %1119 = vmatpush1.msra.mxu0 %v1118
    %1120 = vmatprep.subr.mxu0 0.0
    %v1121 = vand.u32 %v108, 4294901760
    %v1122 = vsub.f32 %v108, %v1121
    %v1123 = vand.u32 %v1122, 4294901760
    %v1124 = vsub.f32 %v1122, %v1123
    %v1125 = vand.u32 %v1124, 4294901760
    %1126 = vmatpush1.msra.mxu0 %v1125
    %1127 = vmatprep.subr.mxu0 0.0
    %1128 = vmatpush1.msra.mxu0 0.0
    %1129 = vmatprep.subr.mxu0 0.0
    %1130 = vmatpush1.msra.mxu0 0.0
    %1131 = vmatprep.subr.mxu0 0.0
    %1132 = vmatpush1.msra.mxu0 0.0
    %1133 = vmatprep.subr.mxu0 0.0
    %1134 = vmatpush1.msra.mxu0 0.0
    %1135 = vmatprep.subr.mxu0 0.0
    %1136 = vmatpush1.msra.mxu0 0.0
    %1137 = vmatprep.subr.mxu0 0.0
    %1138 = vmatpush1.msra.mxu0 0.0
    %1139 = vmatprep.subr.mxu0 0.0
    %1140 = vmatpush1.msra.mxu0 0.0
    %1141 = vmatprep.subr.mxu0 0.0
    %1142 = vmatpush1.msra.mxu0 0.0
    %1143 = vmatprep.subr.mxu0 0.0
    %1144 = vmatpush1.msra.mxu0 0.0
    %1145 = vmatprep.subr.mxu0 0.0
    %1146 = vmatpush1.msra.mxu0 0.0
    %1147 = vmatprep.subr.mxu0 0.0
    %1148 = vmatpush1.msra.mxu0 0.0
    %1149 = vmatprep.subr.mxu0 0.0
    %1150 = vmatpush1.msra.mxu0 0.0
    %1151 = vmatprep.subr.mxu0 0.0
    %1152 = vmatpush1.msra.mxu0 0.0
    %1153 = vmatprep.subr.mxu0 0.0
    %1154 = vmatpush1.msra.mxu0 0.0
    %1155 = vmatprep.subr.mxu0 0.0
    %1156 = vmatpush1.msra.mxu0 0.0
    %1157 = vmatprep.subr.mxu0 0.0
    %1158 = vmatpush1.msra.mxu0 0.0
    %1159 = vmatprep.mubr.f32.mxu0 0.0
    %v1160 = vand.u32 %v886, 4294901760
    %1161 = vmatmul.mubr.f32.gmra.mrb[0].mxu0 %v1160
    %v1162 = vpop.f32.mrb[0].mxu0
    %v1163 = vadd.f32 %v982, %v1162
    %v1164 = vpop.f32.mrb[0].mxu0
    %1165 = vmatprep.mubr.f32.mxu0 0.0
    %v1166 = vand.u32 %v887, 4294901760
    %1167 = vmatmul.mubr.f32.gmra.mrb[0].mxu0 %v1166
    %v1168 = vpop.f32.mrb[0].mxu0
    %v1169 = vadd.f32 %v992, %v1168
    %v1170 = vpop.f32.mrb[0].mxu0
    %1171 = vmatprep.mubr.f32.mxu0 0.0
    %v1172 = vand.u32 %v888, 4294901760
    %1173 = vmatmul.mubr.f32.gmra.mrb[0].mxu0 %v1172
    %v1174 = vpop.f32.mrb[0].mxu0
    %v1175 = vadd.f32 %v1002, %v1174
    %v1176 = vpop.f32.mrb[0].mxu0
    %1177 = vmatprep.mubr.f32.mxu0 0.0
    %v1178 = vand.u32 %v889, 4294901760
    %1179 = vmatmul.mubr.f32.gmra.mrb[0].mxu0 %v1178
    %v1180 = vpop.f32.mrb[0].mxu0
    %v1181 = vadd.f32 %v1012, %v1180
    %v1182 = vpop.f32.mrb[0].mxu0
    %1183 = vdwg.mxu0
    %1184 = vmatprep.subr.mxu0 0.0
    %v1185 = vand.u32 %v48, 4294901760
    %v1186 = vsub.f32 %v48, %v1185
    %1187 = vmatpush1.msra.mxu0 %v1186
    %1188 = vmatprep.subr.mxu0 0.0
    %v1189 = vand.u32 %v52, 4294901760
    %v1190 = vsub.f32 %v52, %v1189
    %1191 = vmatpush1.msra.mxu0 %v1190
    %1192 = vmatprep.subr.mxu0 0.0
    %v1193 = vand.u32 %v56, 4294901760
    %v1194 = vsub.f32 %v56, %v1193
    %1195 = vmatpush1.msra.mxu0 %v1194
    %1196 = vmatprep.subr.mxu0 0.0
    %v1197 = vand.u32 %v60, 4294901760
    %v1198 = vsub.f32 %v60, %v1197
    %1199 = vmatpush1.msra.mxu0 %v1198
    %1200 = vmatprep.subr.mxu0 0.0
    %v1201 = vand.u32 %v64, 4294901760
    %v1202 = vsub.f32 %v64, %v1201
    %1203 = vmatpush1.msra.mxu0 %v1202
    %1204 = vmatprep.subr.mxu0 0.0
    %v1205 = vand.u32 %v68, 4294901760
    %v1206 = vsub.f32 %v68, %v1205
    %1207 = vmatpush1.msra.mxu0 %v1206
    %1208 = vmatprep.subr.mxu0 0.0
    %v1209 = vand.u32 %v72, 4294901760
    %v1210 = vsub.f32 %v72, %v1209
    %1211 = vmatpush1.msra.mxu0 %v1210
    %1212 = vmatprep.subr.mxu0 0.0
    %v1213 = vand.u32 %v76, 4294901760
    %v1214 = vsub.f32 %v76, %v1213
    %1215 = vmatpush1.msra.mxu0 %v1214
    %1216 = vmatprep.subr.mxu0 0.0
    %v1217 = vand.u32 %v80, 4294901760
    %v1218 = vsub.f32 %v80, %v1217
    %1219 = vmatpush1.msra.mxu0 %v1218
    %1220 = vmatprep.subr.mxu0 0.0
    %v1221 = vand.u32 %v84, 4294901760
    %v1222 = vsub.f32 %v84, %v1221
    %1223 = vmatpush1.msra.mxu0 %v1222
    %1224 = vmatprep.subr.mxu0 0.0
    %v1225 = vand.u32 %v88, 4294901760
    %v1226 = vsub.f32 %v88, %v1225
    %1227 = vmatpush1.msra.mxu0 %v1226
    %1228 = vmatprep.subr.mxu0 0.0
    %v1229 = vand.u32 %v92, 4294901760
    %v1230 = vsub.f32 %v92, %v1229
    %1231 = vmatpush1.msra.mxu0 %v1230
    %1232 = vmatprep.subr.mxu0 0.0
    %v1233 = vand.u32 %v96, 4294901760
    %v1234 = vsub.f32 %v96, %v1233
    %1235 = vmatpush1.msra.mxu0 %v1234
    %1236 = vmatprep.subr.mxu0 0.0
    %v1237 = vand.u32 %v100, 4294901760
    %v1238 = vsub.f32 %v100, %v1237
    %1239 = vmatpush1.msra.mxu0 %v1238
    %1240 = vmatprep.subr.mxu0 0.0
    %v1241 = vand.u32 %v104, 4294901760
    %v1242 = vsub.f32 %v104, %v1241
    %1243 = vmatpush1.msra.mxu0 %v1242
    %1244 = vmatprep.subr.mxu0 0.0
    %v1245 = vand.u32 %v108, 4294901760
    %v1246 = vsub.f32 %v108, %v1245
    %1247 = vmatpush1.msra.mxu0 %v1246
    %1248 = vmatprep.subr.mxu0 0.0
    %1249 = vmatpush1.msra.mxu0 0.0
    %1250 = vmatprep.subr.mxu0 0.0
    %1251 = vmatpush1.msra.mxu0 0.0
    %1252 = vmatprep.subr.mxu0 0.0
    %1253 = vmatpush1.msra.mxu0 0.0
    %1254 = vmatprep.subr.mxu0 0.0
    %1255 = vmatpush1.msra.mxu0 0.0
    %1256 = vmatprep.subr.mxu0 0.0
    %1257 = vmatpush1.msra.mxu0 0.0
    %1258 = vmatprep.subr.mxu0 0.0
    %1259 = vmatpush1.msra.mxu0 0.0
    %1260 = vmatprep.subr.mxu0 0.0
    %1261 = vmatpush1.msra.mxu0 0.0
    %1262 = vmatprep.subr.mxu0 0.0
    %1263 = vmatpush1.msra.mxu0 0.0
    %1264 = vmatprep.subr.mxu0 0.0
    %1265 = vmatpush1.msra.mxu0 0.0
    %1266 = vmatprep.subr.mxu0 0.0
    %1267 = vmatpush1.msra.mxu0 0.0
    %1268 = vmatprep.subr.mxu0 0.0
    %1269 = vmatpush1.msra.mxu0 0.0
    %1270 = vmatprep.subr.mxu0 0.0
    %1271 = vmatpush1.msra.mxu0 0.0
    %1272 = vmatprep.subr.mxu0 0.0
    %1273 = vmatpush1.msra.mxu0 0.0
    %1274 = vmatprep.subr.mxu0 0.0
    %1275 = vmatpush1.msra.mxu0 0.0
    %1276 = vmatprep.subr.mxu0 0.0
    %1277 = vmatpush1.msra.mxu0 0.0
    %1278 = vmatprep.subr.mxu0 0.0
    %1279 = vmatpush1.msra.mxu0 0.0
    %1280 = vmatprep.mubr.f32.mxu0 0.0
    %v1281 = vand.u32 %v886, 4294901760
    %v1282 = vsub.f32 %v886, %v1281
    %1283 = vmatmul.mubr.f32.gmra.mrb[0].mxu0 %v1282
    %v1284 = vpop.f32.mrb[0].mxu0
    %v1285 = vadd.f32 %v1163, %v1284
    %v1286 = vpop.f32.mrb[0].mxu0
    %1287 = vmatprep.mubr.f32.mxu0 0.0
    %v1288 = vand.u32 %v887, 4294901760
    %v1289 = vsub.f32 %v887, %v1288
    %1290 = vmatmul.mubr.f32.gmra.mrb[0].mxu0 %v1289
    %v1291 = vpop.f32.mrb[0].mxu0
    %v1292 = vadd.f32 %v1169, %v1291
    %v1293 = vpop.f32.mrb[0].mxu0
    %1294 = vmatprep.mubr.f32.mxu0 0.0
    %v1295 = vand.u32 %v888, 4294901760
    %v1296 = vsub.f32 %v888, %v1295
    %1297 = vmatmul.mubr.f32.gmra.mrb[0].mxu0 %v1296
    %v1298 = vpop.f32.mrb[0].mxu0
    %v1299 = vadd.f32 %v1175, %v1298
    %v1300 = vpop.f32.mrb[0].mxu0
    %1301 = vmatprep.mubr.f32.mxu0 0.0
    %v1302 = vand.u32 %v889, 4294901760
    %v1303 = vsub.f32 %v889, %v1302
    %1304 = vmatmul.mubr.f32.gmra.mrb[0].mxu0 %v1303
    %v1305 = vpop.f32.mrb[0].mxu0
    %v1306 = vadd.f32 %v1181, %v1305
    %v1307 = vpop.f32.mrb[0].mxu0
    %1308 = vdwg.mxu0
    %1309 = vmatprep.subr.mxu0 0.0
    %v1310 = vand.u32 %v48, 4294901760
    %1311 = vmatpush1.msra.mxu0 %v1310
    %1312 = vmatprep.subr.mxu0 0.0
    %v1313 = vand.u32 %v52, 4294901760
    %1314 = vmatpush1.msra.mxu0 %v1313
    %1315 = vmatprep.subr.mxu0 0.0
    %v1316 = vand.u32 %v56, 4294901760
    %1317 = vmatpush1.msra.mxu0 %v1316
    %1318 = vmatprep.subr.mxu0 0.0
    %v1319 = vand.u32 %v60, 4294901760
    %1320 = vmatpush1.msra.mxu0 %v1319
    %1321 = vmatprep.subr.mxu0 0.0
    %v1322 = vand.u32 %v64, 4294901760
    %1323 = vmatpush1.msra.mxu0 %v1322
    %1324 = vmatprep.subr.mxu0 0.0
    %v1325 = vand.u32 %v68, 4294901760
    %1326 = vmatpush1.msra.mxu0 %v1325
    %1327 = vmatprep.subr.mxu0 0.0
    %v1328 = vand.u32 %v72, 4294901760
    %1329 = vmatpush1.msra.mxu0 %v1328
    %1330 = vmatprep.subr.mxu0 0.0
    %v1331 = vand.u32 %v76, 4294901760
    %1332 = vmatpush1.msra.mxu0 %v1331
    %1333 = vmatprep.subr.mxu0 0.0
    %v1334 = vand.u32 %v80, 4294901760
    %1335 = vmatpush1.msra.mxu0 %v1334
    %1336 = vmatprep.subr.mxu0 0.0
    %v1337 = vand.u32 %v84, 4294901760
    %1338 = vmatpush1.msra.mxu0 %v1337
    %1339 = vmatprep.subr.mxu0 0.0
    %v1340 = vand.u32 %v88, 4294901760
    %1341 = vmatpush1.msra.mxu0 %v1340
    %1342 = vmatprep.subr.mxu0 0.0
    %v1343 = vand.u32 %v92, 4294901760
    %1344 = vmatpush1.msra.mxu0 %v1343
    %1345 = vmatprep.subr.mxu0 0.0
    %v1346 = vand.u32 %v96, 4294901760
    %1347 = vmatpush1.msra.mxu0 %v1346
    %1348 = vmatprep.subr.mxu0 0.0
    %v1349 = vand.u32 %v100, 4294901760
    %1350 = vmatpush1.msra.mxu0 %v1349
    %1351 = vmatprep.subr.mxu0 0.0
    %v1352 = vand.u32 %v104, 4294901760
    %1353 = vmatpush1.msra.mxu0 %v1352
    %1354 = vmatprep.subr.mxu0 0.0
    %v1355 = vand.u32 %v108, 4294901760
    %1356 = vmatpush1.msra.mxu0 %v1355
    %1357 = vmatprep.subr.mxu0 0.0
    %1358 = vmatpush1.msra.mxu0 0.0
    %1359 = vmatprep.subr.mxu0 0.0
    %1360 = vmatpush1.msra.mxu0 0.0
    %1361 = vmatprep.subr.mxu0 0.0
    %1362 = vmatpush1.msra.mxu0 0.0
    %1363 = vmatprep.subr.mxu0 0.0
    %1364 = vmatpush1.msra.mxu0 0.0
    %1365 = vmatprep.subr.mxu0 0.0
    %1366 = vmatpush1.msra.mxu0 0.0
    %1367 = vmatprep.subr.mxu0 0.0
    %1368 = vmatpush1.msra.mxu0 0.0
    %1369 = vmatprep.subr.mxu0 0.0
    %1370 = vmatpush1.msra.mxu0 0.0
    %1371 = vmatprep.subr.mxu0 0.0
    %1372 = vmatpush1.msra.mxu0 0.0
    %1373 = vmatprep.subr.mxu0 0.0
    %1374 = vmatpush1.msra.mxu0 0.0
    %1375 = vmatprep.subr.mxu0 0.0
    %1376 = vmatpush1.msra.mxu0 0.0
    %1377 = vmatprep.subr.mxu0 0.0
    %1378 = vmatpush1.msra.mxu0 0.0
    %1379 = vmatprep.subr.mxu0 0.0
    %1380 = vmatpush1.msra.mxu0 0.0
    %1381 = vmatprep.subr.mxu0 0.0
    %1382 = vmatpush1.msra.mxu0 0.0
    %1383 = vmatprep.subr.mxu0 0.0
    %1384 = vmatpush1.msra.mxu0 0.0
    %1385 = vmatprep.subr.mxu0 0.0
    %1386 = vmatpush1.msra.mxu0 0.0
    %1387 = vmatprep.subr.mxu0 0.0
    %1388 = vmatpush1.msra.mxu0 0.0
    %1389 = vmatprep.mubr.f32.mxu0 0.0
    %v1390 = vand.u32 %v886, 4294901760
    %v1391 = vsub.f32 %v886, %v1390
    %v1392 = vand.u32 %v1391, 4294901760
    %1393 = vmatmul.mubr.f32.gmra.mrb[0].mxu0 %v1392
    %v1394 = vpop.f32.mrb[0].mxu0
    %v1395 = vadd.f32 %v1285, %v1394
    %v1396 = vpop.f32.mrb[0].mxu0
    %1397 = vmatprep.mubr.f32.mxu0 0.0
    %v1398 = vand.u32 %v887, 4294901760
    %v1399 = vsub.f32 %v887, %v1398
    %v1400 = vand.u32 %v1399, 4294901760
    %1401 = vmatmul.mubr.f32.gmra.mrb[0].mxu0 %v1400
    %v1402 = vpop.f32.mrb[0].mxu0
    %v1403 = vadd.f32 %v1292, %v1402
    %v1404 = vpop.f32.mrb[0].mxu0
    %1405 = vmatprep.mubr.f32.mxu0 0.0
    %v1406 = vand.u32 %v888, 4294901760
    %v1407 = vsub.f32 %v888, %v1406
    %v1408 = vand.u32 %v1407, 4294901760
    %1409 = vmatmul.mubr.f32.gmra.mrb[0].mxu0 %v1408
    %v1410 = vpop.f32.mrb[0].mxu0
    %v1411 = vadd.f32 %v1299, %v1410
    %v1412 = vpop.f32.mrb[0].mxu0
    %1413 = vmatprep.mubr.f32.mxu0 0.0
    %v1414 = vand.u32 %v889, 4294901760
    %v1415 = vsub.f32 %v889, %v1414
    %v1416 = vand.u32 %v1415, 4294901760
    %1417 = vmatmul.mubr.f32.gmra.mrb[0].mxu0 %v1416
    %v1418 = vpop.f32.mrb[0].mxu0
    %v1419 = vadd.f32 %v1306, %v1418
    %v1420 = vpop.f32.mrb[0].mxu0
    %1421 = vdwg.mxu0
    %1422 = vmatprep.subr.mxu0 0.0
    %v1423 = vand.u32 %v48, 4294901760
    %v1424 = vsub.f32 %v48, %v1423
    %v1425 = vand.u32 %v1424, 4294901760
    %1426 = vmatpush1.msra.mxu0 %v1425
    %1427 = vmatprep.subr.mxu0 0.0
    %v1428 = vand.u32 %v52, 4294901760
    %v1429 = vsub.f32 %v52, %v1428
    %v1430 = vand.u32 %v1429, 4294901760
    %1431 = vmatpush1.msra.mxu0 %v1430
    %1432 = vmatprep.subr.mxu0 0.0
    %v1433 = vand.u32 %v56, 4294901760
    %v1434 = vsub.f32 %v56, %v1433
    %v1435 = vand.u32 %v1434, 4294901760
    %1436 = vmatpush1.msra.mxu0 %v1435
    %1437 = vmatprep.subr.mxu0 0.0
    %v1438 = vand.u32 %v60, 4294901760
    %v1439 = vsub.f32 %v60, %v1438
    %v1440 = vand.u32 %v1439, 4294901760
    %1441 = vmatpush1.msra.mxu0 %v1440
    %1442 = vmatprep.subr.mxu0 0.0
    %v1443 = vand.u32 %v64, 4294901760
    %v1444 = vsub.f32 %v64, %v1443
    %v1445 = vand.u32 %v1444, 4294901760
    %1446 = vmatpush1.msra.mxu0 %v1445
    %1447 = vmatprep.subr.mxu0 0.0
    %v1448 = vand.u32 %v68, 4294901760
    %v1449 = vsub.f32 %v68, %v1448
    %v1450 = vand.u32 %v1449, 4294901760
    %1451 = vmatpush1.msra.mxu0 %v1450
    %1452 = vmatprep.subr.mxu0 0.0
    %v1453 = vand.u32 %v72, 4294901760
    %v1454 = vsub.f32 %v72, %v1453
    %v1455 = vand.u32 %v1454, 4294901760
    %1456 = vmatpush1.msra.mxu0 %v1455
    %1457 = vmatprep.subr.mxu0 0.0
    %v1458 = vand.u32 %v76, 4294901760
    %v1459 = vsub.f32 %v76, %v1458
    %v1460 = vand.u32 %v1459, 4294901760
    %1461 = vmatpush1.msra.mxu0 %v1460
    %1462 = vmatprep.subr.mxu0 0.0
    %v1463 = vand.u32 %v80, 4294901760
    %v1464 = vsub.f32 %v80, %v1463
    %v1465 = vand.u32 %v1464, 4294901760
    %1466 = vmatpush1.msra.mxu0 %v1465
    %1467 = vmatprep.subr.mxu0 0.0
    %v1468 = vand.u32 %v84, 4294901760
    %v1469 = vsub.f32 %v84, %v1468
    %v1470 = vand.u32 %v1469, 4294901760
    %1471 = vmatpush1.msra.mxu0 %v1470
    %1472 = vmatprep.subr.mxu0 0.0
    %v1473 = vand.u32 %v88, 4294901760
    %v1474 = vsub.f32 %v88, %v1473
    %v1475 = vand.u32 %v1474, 4294901760
    %1476 = vmatpush1.msra.mxu0 %v1475
    %1477 = vmatprep.subr.mxu0 0.0
    %v1478 = vand.u32 %v92, 4294901760
    %v1479 = vsub.f32 %v92, %v1478
    %v1480 = vand.u32 %v1479, 4294901760
    %1481 = vmatpush1.msra.mxu0 %v1480
    %1482 = vmatprep.subr.mxu0 0.0
    %v1483 = vand.u32 %v96, 4294901760
    %v1484 = vsub.f32 %v96, %v1483
    %v1485 = vand.u32 %v1484, 4294901760
    %1486 = vmatpush1.msra.mxu0 %v1485
    %1487 = vmatprep.subr.mxu0 0.0
    %v1488 = vand.u32 %v100, 4294901760
    %v1489 = vsub.f32 %v100, %v1488
    %v1490 = vand.u32 %v1489, 4294901760
    %1491 = vmatpush1.msra.mxu0 %v1490
    %1492 = vmatprep.subr.mxu0 0.0
    %v1493 = vand.u32 %v104, 4294901760
    %v1494 = vsub.f32 %v104, %v1493
    %v1495 = vand.u32 %v1494, 4294901760
    %1496 = vmatpush1.msra.mxu0 %v1495
    %1497 = vmatprep.subr.mxu0 0.0
    %v1498 = vand.u32 %v108, 4294901760
    %v1499 = vsub.f32 %v108, %v1498
    %v1500 = vand.u32 %v1499, 4294901760
    %1501 = vmatpush1.msra.mxu0 %v1500
    %1502 = vmatprep.subr.mxu0 0.0
    %1503 = vmatpush1.msra.mxu0 0.0
    %1504 = vmatprep.subr.mxu0 0.0
    %1505 = vmatpush1.msra.mxu0 0.0
    %1506 = vmatprep.subr.mxu0 0.0
    %1507 = vmatpush1.msra.mxu0 0.0
    %1508 = vmatprep.subr.mxu0 0.0
    %1509 = vmatpush1.msra.mxu0 0.0
    %1510 = vmatprep.subr.mxu0 0.0
    %1511 = vmatpush1.msra.mxu0 0.0
    %1512 = vmatprep.subr.mxu0 0.0
    %1513 = vmatpush1.msra.mxu0 0.0
    %1514 = vmatprep.subr.mxu0 0.0
    %1515 = vmatpush1.msra.mxu0 0.0
    %1516 = vmatprep.subr.mxu0 0.0
    %1517 = vmatpush1.msra.mxu0 0.0
    %1518 = vmatprep.subr.mxu0 0.0
    %1519 = vmatpush1.msra.mxu0 0.0
    %1520 = vmatprep.subr.mxu0 0.0
    %1521 = vmatpush1.msra.mxu0 0.0
    %1522 = vmatprep.subr.mxu0 0.0
    %1523 = vmatpush1.msra.mxu0 0.0
    %1524 = vmatprep.subr.mxu0 0.0
    %1525 = vmatpush1.msra.mxu0 0.0
    %1526 = vmatprep.subr.mxu0 0.0
    %1527 = vmatpush1.msra.mxu0 0.0
    %1528 = vmatprep.subr.mxu0 0.0
    %1529 = vmatpush1.msra.mxu0 0.0
    %1530 = vmatprep.subr.mxu0 0.0
    %1531 = vmatpush1.msra.mxu0 0.0
    %1532 = vmatprep.subr.mxu0 0.0
    %1533 = vmatpush1.msra.mxu0 0.0
    %1534 = vmatprep.mubr.f32.mxu0 0.0
    %v1535 = vand.u32 %v886, 4294901760
    %1536 = vmatmul.mubr.f32.gmra.mrb[0].mxu0 %v1535
    %v1537 = vpop.f32.mrb[0].mxu0
    %v1538 = vadd.f32 %v1395, %v1537
    %v1539 = vpop.f32.mrb[0].mxu0
    %1540 = vmatprep.mubr.f32.mxu0 0.0
    %v1541 = vand.u32 %v887, 4294901760
    %1542 = vmatmul.mubr.f32.gmra.mrb[0].mxu0 %v1541
    %v1543 = vpop.f32.mrb[0].mxu0
    %v1544 = vadd.f32 %v1403, %v1543
    %v1545 = vpop.f32.mrb[0].mxu0
    %1546 = vmatprep.mubr.f32.mxu0 0.0
    %v1547 = vand.u32 %v888, 4294901760
    %1548 = vmatmul.mubr.f32.gmra.mrb[0].mxu0 %v1547
    %v1549 = vpop.f32.mrb[0].mxu0
    %v1550 = vadd.f32 %v1411, %v1549
    %v1551 = vpop.f32.mrb[0].mxu0
    %1552 = vmatprep.mubr.f32.mxu0 0.0
    %v1553 = vand.u32 %v889, 4294901760
    %1554 = vmatmul.mubr.f32.gmra.mrb[0].mxu0 %v1553
    %v1555 = vpop.f32.mrb[0].mxu0
    %v1556 = vadd.f32 %v1419, %v1555
    %v1557 = vpop.f32.mrb[0].mxu0
    %1558 = vdwg.mxu0
    %1559 = vmatprep.subr.mxu0 0.0
    %v1560 = vand.u32 %v48, 4294901760
    %1561 = vmatpush1.msra.mxu0 %v1560
    %1562 = vmatprep.subr.mxu0 0.0
    %v1563 = vand.u32 %v52, 4294901760
    %1564 = vmatpush1.msra.mxu0 %v1563
    %1565 = vmatprep.subr.mxu0 0.0
    %v1566 = vand.u32 %v56, 4294901760
    %1567 = vmatpush1.msra.mxu0 %v1566
    %1568 = vmatprep.subr.mxu0 0.0
    %v1569 = vand.u32 %v60, 4294901760
    %1570 = vmatpush1.msra.mxu0 %v1569
    %1571 = vmatprep.subr.mxu0 0.0
    %v1572 = vand.u32 %v64, 4294901760
    %1573 = vmatpush1.msra.mxu0 %v1572
    %1574 = vmatprep.subr.mxu0 0.0
    %v1575 = vand.u32 %v68, 4294901760
    %1576 = vmatpush1.msra.mxu0 %v1575
    %1577 = vmatprep.subr.mxu0 0.0
    %v1578 = vand.u32 %v72, 4294901760
    %1579 = vmatpush1.msra.mxu0 %v1578
    %1580 = vmatprep.subr.mxu0 0.0
    %v1581 = vand.u32 %v76, 4294901760
    %1582 = vmatpush1.msra.mxu0 %v1581
    %1583 = vmatprep.subr.mxu0 0.0
    %v1584 = vand.u32 %v80, 4294901760
    %1585 = vmatpush1.msra.mxu0 %v1584
    %1586 = vmatprep.subr.mxu0 0.0
    %v1587 = vand.u32 %v84, 4294901760
    %1588 = vmatpush1.msra.mxu0 %v1587
    %1589 = vmatprep.subr.mxu0 0.0
    %v1590 = vand.u32 %v88, 4294901760
    %1591 = vmatpush1.msra.mxu0 %v1590
    %1592 = vmatprep.subr.mxu0 0.0
    %v1593 = vand.u32 %v92, 4294901760
    %1594 = vmatpush1.msra.mxu0 %v1593
    %1595 = vmatprep.subr.mxu0 0.0
    %v1596 = vand.u32 %v96, 4294901760
    %1597 = vmatpush1.msra.mxu0 %v1596
    %1598 = vmatprep.subr.mxu0 0.0
    %v1599 = vand.u32 %v100, 4294901760
    %1600 = vmatpush1.msra.mxu0 %v1599
    %1601 = vmatprep.subr.mxu0 0.0
    %v1602 = vand.u32 %v104, 4294901760
    %1603 = vmatpush1.msra.mxu0 %v1602
    %1604 = vmatprep.subr.mxu0 0.0
    %v1605 = vand.u32 %v108, 4294901760
    %1606 = vmatpush1.msra.mxu0 %v1605
    %1607 = vmatprep.subr.mxu0 0.0
    %1608 = vmatpush1.msra.mxu0 0.0
    %1609 = vmatprep.subr.mxu0 0.0
    %1610 = vmatpush1.msra.mxu0 0.0
    %1611 = vmatprep.subr.mxu0 0.0
    %1612 = vmatpush1.msra.mxu0 0.0
    %1613 = vmatprep.subr.mxu0 0.0
    %1614 = vmatpush1.msra.mxu0 0.0
    %1615 = vmatprep.subr.mxu0 0.0
    %1616 = vmatpush1.msra.mxu0 0.0
    %1617 = vmatprep.subr.mxu0 0.0
    %1618 = vmatpush1.msra.mxu0 0.0
    %1619 = vmatprep.subr.mxu0 0.0
    %1620 = vmatpush1.msra.mxu0 0.0
    %1621 = vmatprep.subr.mxu0 0.0
    %1622 = vmatpush1.msra.mxu0 0.0
    %1623 = vmatprep.subr.mxu0 0.0
    %1624 = vmatpush1.msra.mxu0 0.0
    %1625 = vmatprep.subr.mxu0 0.0
    %1626 = vmatpush1.msra.mxu0 0.0
    %1627 = vmatprep.subr.mxu0 0.0
    %1628 = vmatpush1.msra.mxu0 0.0
    %1629 = vmatprep.subr.mxu0 0.0
    %1630 = vmatpush1.msra.mxu0 0.0
    %1631 = vmatprep.subr.mxu0 0.0
    %1632 = vmatpush1.msra.mxu0 0.0
    %1633 = vmatprep.subr.mxu0 0.0
    %1634 = vmatpush1.msra.mxu0 0.0
    %1635 = vmatprep.subr.mxu0 0.0
    %1636 = vmatpush1.msra.mxu0 0.0
    %1637 = vmatprep.subr.mxu0 0.0
    %1638 = vmatpush1.msra.mxu0 0.0
    %1639 = vmatprep.mubr.f32.mxu0 0.0
    %v1640 = vand.u32 %v886, 4294901760
    %1641 = vmatmul.mubr.f32.gmra.mrb[0].mxu0 %v1640
    %v1642 = vpop.f32.mrb[0].mxu0
    %v1643 = vadd.f32 %v1538, %v1642
    %v1644 = vpop.f32.mrb[0].mxu0
    %1645 = vmatprep.mubr.f32.mxu0 0.0
    %v1646 = vand.u32 %v887, 4294901760
    %1647 = vmatmul.mubr.f32.gmra.mrb[0].mxu0 %v1646
    %v1648 = vpop.f32.mrb[0].mxu0
    %v1649 = vadd.f32 %v1544, %v1648
    %v1650 = vpop.f32.mrb[0].mxu0
    %1651 = vmatprep.mubr.f32.mxu0 0.0
    %v1652 = vand.u32 %v888, 4294901760
    %1653 = vmatmul.mubr.f32.gmra.mrb[0].mxu0 %v1652
    %v1654 = vpop.f32.mrb[0].mxu0
    %v1655 = vadd.f32 %v1550, %v1654
    %v1656 = vpop.f32.mrb[0].mxu0
    %1657 = vmatprep.mubr.f32.mxu0 0.0
    %v1658 = vand.u32 %v889, 4294901760
    %1659 = vmatmul.mubr.f32.gmra.mrb[0].mxu0 %v1658
    %v1660 = vpop.f32.mrb[0].mxu0
    %v1661 = vadd.f32 %v1556, %v1660
    %v1662 = vpop.f32.mrb[0].mxu0
    %1663 = vdwg.mxu0
    %v1664 = vmax.f32 %v1643, 0.0
    %v1665 = vmax.f32 %v1649, 0.0
    %v1666 = vmax.f32 %v1655, 0.0
    %v1667 = vmax.f32 %v1661, 0.0
    %v1668 = vmax.f32 %v1664, %v1665
    %v1669 = vmax.f32 %v1668, %v1666
    %v1670 = vmax.f32 %v1669, %v1667
    %v1671 = vlaneseq
    %v1672 = vshrl.u32 %v1671, 7
    %v1673 = vsub.s32 2, %v1672
    %v1674 = vrot.slane %v111, %v1673
    %1675 = vmatprep.subr.mxu0 0.0
    %v1676 = vand.u32 %v49, 4294901760
    %1677 = vmatpush1.msra.mxu0 %v1676
    %1678 = vmatprep.subr.mxu0 0.0
    %v1679 = vand.u32 %v53, 4294901760
    %1680 = vmatpush1.msra.mxu0 %v1679
    %1681 = vmatprep.subr.mxu0 0.0
    %v1682 = vand.u32 %v57, 4294901760
    %1683 = vmatpush1.msra.mxu0 %v1682
    %1684 = vmatprep.subr.mxu0 0.0
    %v1685 = vand.u32 %v61, 4294901760
    %1686 = vmatpush1.msra.mxu0 %v1685
    %1687 = vmatprep.subr.mxu0 0.0
    %v1688 = vand.u32 %v65, 4294901760
    %1689 = vmatpush1.msra.mxu0 %v1688
    %1690 = vmatprep.subr.mxu0 0.0
    %v1691 = vand.u32 %v69, 4294901760
    %1692 = vmatpush1.msra.mxu0 %v1691
    %1693 = vmatprep.subr.mxu0 0.0
    %v1694 = vand.u32 %v73, 4294901760
    %1695 = vmatpush1.msra.mxu0 %v1694
    %1696 = vmatprep.subr.mxu0 0.0
    %v1697 = vand.u32 %v77, 4294901760
    %1698 = vmatpush1.msra.mxu0 %v1697
    %1699 = vmatprep.subr.mxu0 0.0
    %v1700 = vand.u32 %v81, 4294901760
    %1701 = vmatpush1.msra.mxu0 %v1700
    %1702 = vmatprep.subr.mxu0 0.0
    %v1703 = vand.u32 %v85, 4294901760
    %1704 = vmatpush1.msra.mxu0 %v1703
    %1705 = vmatprep.subr.mxu0 0.0
    %v1706 = vand.u32 %v89, 4294901760
    %1707 = vmatpush1.msra.mxu0 %v1706
    %1708 = vmatprep.subr.mxu0 0.0
    %v1709 = vand.u32 %v93, 4294901760
    %1710 = vmatpush1.msra.mxu0 %v1709
    %1711 = vmatprep.subr.mxu0 0.0
    %v1712 = vand.u32 %v97, 4294901760
    %1713 = vmatpush1.msra.mxu0 %v1712
    %1714 = vmatprep.subr.mxu0 0.0
    %v1715 = vand.u32 %v101, 4294901760
    %1716 = vmatpush1.msra.mxu0 %v1715
    %1717 = vmatprep.subr.mxu0 0.0
    %v1718 = vand.u32 %v105, 4294901760
    %1719 = vmatpush1.msra.mxu0 %v1718
    %1720 = vmatprep.subr.mxu0 0.0
    %v1721 = vand.u32 %v109, 4294901760
    %1722 = vmatpush1.msra.mxu0 %v1721
    %1723 = vmatprep.subr.mxu0 0.0
    %1724 = vmatpush1.msra.mxu0 0.0
    %1725 = vmatprep.subr.mxu0 0.0
    %1726 = vmatpush1.msra.mxu0 0.0
    %1727 = vmatprep.subr.mxu0 0.0
    %1728 = vmatpush1.msra.mxu0 0.0
    %1729 = vmatprep.subr.mxu0 0.0
    %1730 = vmatpush1.msra.mxu0 0.0
    %1731 = vmatprep.subr.mxu0 0.0
    %1732 = vmatpush1.msra.mxu0 0.0
    %1733 = vmatprep.subr.mxu0 0.0
    %1734 = vmatpush1.msra.mxu0 0.0
    %1735 = vmatprep.subr.mxu0 0.0
    %1736 = vmatpush1.msra.mxu0 0.0
    %1737 = vmatprep.subr.mxu0 0.0
    %1738 = vmatpush1.msra.mxu0 0.0
    %1739 = vmatprep.subr.mxu0 0.0
    %1740 = vmatpush1.msra.mxu0 0.0
    %1741 = vmatprep.subr.mxu0 0.0
    %1742 = vmatpush1.msra.mxu0 0.0
    %1743 = vmatprep.subr.mxu0 0.0
    %1744 = vmatpush1.msra.mxu0 0.0
    %1745 = vmatprep.subr.mxu0 0.0
    %1746 = vmatpush1.msra.mxu0 0.0
    %1747 = vmatprep.subr.mxu0 0.0
    %1748 = vmatpush1.msra.mxu0 0.0
    %1749 = vmatprep.subr.mxu0 0.0
    %1750 = vmatpush1.msra.mxu0 0.0
    %1751 = vmatprep.subr.mxu0 0.0
    %1752 = vmatpush1.msra.mxu0 0.0
    %1753 = vmatprep.subr.mxu0 0.0
    %1754 = vmatpush1.msra.mxu0 0.0
    %1755 = vmatprep.mubr.f32.mxu0 0.0
    %v1756 = vand.u32 %v1670, 4294901760
    %v1757 = vsub.f32 %v1670, %v1756
    %v1758 = vand.u32 %v1757, 4294901760
    %v1759 = vsub.f32 %v1757, %v1758
    %v1760 = vand.u32 %v1759, 4294901760
    %1761 = vmatmul.mubr.f32.gmra.mrb[0].mxu0 %v1760
    %v1762 = vpop.f32.mrb[0].mxu0
    %v1763 = vadd.f32 %v1674, %v1762
    %v1764 = vpop.f32.mrb[0].mxu0
    %1765 = vdwg.mxu0
    %1766 = vmatprep.subr.mxu0 0.0
    %v1767 = vand.u32 %v49, 4294901760
    %v1768 = vsub.f32 %v49, %v1767
    %v1769 = vand.u32 %v1768, 4294901760
    %v1770 = vsub.f32 %v1768, %v1769
    %v1771 = vand.u32 %v1770, 4294901760
    %1772 = vmatpush1.msra.mxu0 %v1771
    %1773 = vmatprep.subr.mxu0 0.0
    %v1774 = vand.u32 %v53, 4294901760
    %v1775 = vsub.f32 %v53, %v1774
    %v1776 = vand.u32 %v1775, 4294901760
    %v1777 = vsub.f32 %v1775, %v1776
    %v1778 = vand.u32 %v1777, 4294901760
    %1779 = vmatpush1.msra.mxu0 %v1778
    %1780 = vmatprep.subr.mxu0 0.0
    %v1781 = vand.u32 %v57, 4294901760
    %v1782 = vsub.f32 %v57, %v1781
    %v1783 = vand.u32 %v1782, 4294901760
    %v1784 = vsub.f32 %v1782, %v1783
    %v1785 = vand.u32 %v1784, 4294901760
    %1786 = vmatpush1.msra.mxu0 %v1785
    %1787 = vmatprep.subr.mxu0 0.0
    %v1788 = vand.u32 %v61, 4294901760
    %v1789 = vsub.f32 %v61, %v1788
    %v1790 = vand.u32 %v1789, 4294901760
    %v1791 = vsub.f32 %v1789, %v1790
    %v1792 = vand.u32 %v1791, 4294901760
    %1793 = vmatpush1.msra.mxu0 %v1792
    %1794 = vmatprep.subr.mxu0 0.0
    %v1795 = vand.u32 %v65, 4294901760
    %v1796 = vsub.f32 %v65, %v1795
    %v1797 = vand.u32 %v1796, 4294901760
    %v1798 = vsub.f32 %v1796, %v1797
    %v1799 = vand.u32 %v1798, 4294901760
    %1800 = vmatpush1.msra.mxu0 %v1799
    %1801 = vmatprep.subr.mxu0 0.0
    %v1802 = vand.u32 %v69, 4294901760
    %v1803 = vsub.f32 %v69, %v1802
    %v1804 = vand.u32 %v1803, 4294901760
    %v1805 = vsub.f32 %v1803, %v1804
    %v1806 = vand.u32 %v1805, 4294901760
    %1807 = vmatpush1.msra.mxu0 %v1806
    %1808 = vmatprep.subr.mxu0 0.0
    %v1809 = vand.u32 %v73, 4294901760
    %v1810 = vsub.f32 %v73, %v1809
    %v1811 = vand.u32 %v1810, 4294901760
    %v1812 = vsub.f32 %v1810, %v1811
    %v1813 = vand.u32 %v1812, 4294901760
    %1814 = vmatpush1.msra.mxu0 %v1813
    %1815 = vmatprep.subr.mxu0 0.0
    %v1816 = vand.u32 %v77, 4294901760
    %v1817 = vsub.f32 %v77, %v1816
    %v1818 = vand.u32 %v1817, 4294901760
    %v1819 = vsub.f32 %v1817, %v1818
    %v1820 = vand.u32 %v1819, 4294901760
    %1821 = vmatpush1.msra.mxu0 %v1820
    %1822 = vmatprep.subr.mxu0 0.0
    %v1823 = vand.u32 %v81, 4294901760
    %v1824 = vsub.f32 %v81, %v1823
    %v1825 = vand.u32 %v1824, 4294901760
    %v1826 = vsub.f32 %v1824, %v1825
    %v1827 = vand.u32 %v1826, 4294901760
    %1828 = vmatpush1.msra.mxu0 %v1827
    %1829 = vmatprep.subr.mxu0 0.0
    %v1830 = vand.u32 %v85, 4294901760
    %v1831 = vsub.f32 %v85, %v1830
    %v1832 = vand.u32 %v1831, 4294901760
    %v1833 = vsub.f32 %v1831, %v1832
    %v1834 = vand.u32 %v1833, 4294901760
    %1835 = vmatpush1.msra.mxu0 %v1834
    %1836 = vmatprep.subr.mxu0 0.0
    %v1837 = vand.u32 %v89, 4294901760
    %v1838 = vsub.f32 %v89, %v1837
    %v1839 = vand.u32 %v1838, 4294901760
    %v1840 = vsub.f32 %v1838, %v1839
    %v1841 = vand.u32 %v1840, 4294901760
    %1842 = vmatpush1.msra.mxu0 %v1841
    %1843 = vmatprep.subr.mxu0 0.0
    %v1844 = vand.u32 %v93, 4294901760
    %v1845 = vsub.f32 %v93, %v1844
    %v1846 = vand.u32 %v1845, 4294901760
    %v1847 = vsub.f32 %v1845, %v1846
    %v1848 = vand.u32 %v1847, 4294901760
    %1849 = vmatpush1.msra.mxu0 %v1848
    %1850 = vmatprep.subr.mxu0 0.0
    %v1851 = vand.u32 %v97, 4294901760
    %v1852 = vsub.f32 %v97, %v1851
    %v1853 = vand.u32 %v1852, 4294901760
    %v1854 = vsub.f32 %v1852, %v1853
    %v1855 = vand.u32 %v1854, 4294901760
    %1856 = vmatpush1.msra.mxu0 %v1855
    %1857 = vmatprep.subr.mxu0 0.0
    %v1858 = vand.u32 %v101, 4294901760
    %v1859 = vsub.f32 %v101, %v1858
    %v1860 = vand.u32 %v1859, 4294901760
    %v1861 = vsub.f32 %v1859, %v1860
    %v1862 = vand.u32 %v1861, 4294901760
    %1863 = vmatpush1.msra.mxu0 %v1862
    %1864 = vmatprep.subr.mxu0 0.0
    %v1865 = vand.u32 %v105, 4294901760
    %v1866 = vsub.f32 %v105, %v1865
    %v1867 = vand.u32 %v1866, 4294901760
    %v1868 = vsub.f32 %v1866, %v1867
    %v1869 = vand.u32 %v1868, 4294901760
    %1870 = vmatpush1.msra.mxu0 %v1869
    %1871 = vmatprep.subr.mxu0 0.0
    %v1872 = vand.u32 %v109, 4294901760
    %v1873 = vsub.f32 %v109, %v1872
    %v1874 = vand.u32 %v1873, 4294901760
    %v1875 = vsub.f32 %v1873, %v1874
    %v1876 = vand.u32 %v1875, 4294901760
    %1877 = vmatpush1.msra.mxu0 %v1876
    %1878 = vmatprep.subr.mxu0 0.0
    %1879 = vmatpush1.msra.mxu0 0.0
    %1880 = vmatprep.subr.mxu0 0.0
    %1881 = vmatpush1.msra.mxu0 0.0
    %1882 = vmatprep.subr.mxu0 0.0
    %1883 = vmatpush1.msra.mxu0 0.0
    %1884 = vmatprep.subr.mxu0 0.0
    %1885 = vmatpush1.msra.mxu0 0.0
    %1886 = vmatprep.subr.mxu0 0.0
    %1887 = vmatpush1.msra.mxu0 0.0
    %1888 = vmatprep.subr.mxu0 0.0
    %1889 = vmatpush1.msra.mxu0 0.0
    %1890 = vmatprep.subr.mxu0 0.0
    %1891 = vmatpush1.msra.mxu0 0.0
    %1892 = vmatprep.subr.mxu0 0.0
    %1893 = vmatpush1.msra.mxu0 0.0
    %1894 = vmatprep.subr.mxu0 0.0
    %1895 = vmatpush1.msra.mxu0 0.0
    %1896 = vmatprep.subr.mxu0 0.0
    %1897 = vmatpush1.msra.mxu0 0.0
    %1898 = vmatprep.subr.mxu0 0.0
    %1899 = vmatpush1.msra.mxu0 0.0
    %1900 = vmatprep.subr.mxu0 0.0
    %1901 = vmatpush1.msra.mxu0 0.0
    %1902 = vmatprep.subr.mxu0 0.0
    %1903 = vmatpush1.msra.mxu0 0.0
    %1904 = vmatprep.subr.mxu0 0.0
    %1905 = vmatpush1.msra.mxu0 0.0
    %1906 = vmatprep.subr.mxu0 0.0
    %1907 = vmatpush1.msra.mxu0 0.0
    %1908 = vmatprep.subr.mxu0 0.0
    %1909 = vmatpush1.msra.mxu0 0.0
    %1910 = vmatprep.mubr.f32.mxu0 0.0
    %v1911 = vand.u32 %v1670, 4294901760
    %1912 = vmatmul.mubr.f32.gmra.mrb[0].mxu0 %v1911
    %v1913 = vpop.f32.mrb[0].mxu0
    %v1914 = vadd.f32 %v1763, %v1913
    %v1915 = vpop.f32.mrb[0].mxu0
    %1916 = vdwg.mxu0
    %1917 = vmatprep.subr.mxu0 0.0
    %v1918 = vand.u32 %v49, 4294901760
    %v1919 = vsub.f32 %v49, %v1918
    %1920 = vmatpush1.msra.mxu0 %v1919
    %1921 = vmatprep.subr.mxu0 0.0
    %v1922 = vand.u32 %v53, 4294901760
    %v1923 = vsub.f32 %v53, %v1922
    %1924 = vmatpush1.msra.mxu0 %v1923
    %1925 = vmatprep.subr.mxu0 0.0
    %v1926 = vand.u32 %v57, 4294901760
    %v1927 = vsub.f32 %v57, %v1926
    %1928 = vmatpush1.msra.mxu0 %v1927
    %1929 = vmatprep.subr.mxu0 0.0
    %v1930 = vand.u32 %v61, 4294901760
    %v1931 = vsub.f32 %v61, %v1930
    %1932 = vmatpush1.msra.mxu0 %v1931
    %1933 = vmatprep.subr.mxu0 0.0
    %v1934 = vand.u32 %v65, 4294901760
    %v1935 = vsub.f32 %v65, %v1934
    %1936 = vmatpush1.msra.mxu0 %v1935
    %1937 = vmatprep.subr.mxu0 0.0
    %v1938 = vand.u32 %v69, 4294901760
    %v1939 = vsub.f32 %v69, %v1938
    %1940 = vmatpush1.msra.mxu0 %v1939
    %1941 = vmatprep.subr.mxu0 0.0
    %v1942 = vand.u32 %v73, 4294901760
    %v1943 = vsub.f32 %v73, %v1942
    %1944 = vmatpush1.msra.mxu0 %v1943
    %1945 = vmatprep.subr.mxu0 0.0
    %v1946 = vand.u32 %v77, 4294901760
    %v1947 = vsub.f32 %v77, %v1946
    %1948 = vmatpush1.msra.mxu0 %v1947
    %1949 = vmatprep.subr.mxu0 0.0
    %v1950 = vand.u32 %v81, 4294901760
    %v1951 = vsub.f32 %v81, %v1950
    %1952 = vmatpush1.msra.mxu0 %v1951
    %1953 = vmatprep.subr.mxu0 0.0
    %v1954 = vand.u32 %v85, 4294901760
    %v1955 = vsub.f32 %v85, %v1954
    %1956 = vmatpush1.msra.mxu0 %v1955
    %1957 = vmatprep.subr.mxu0 0.0
    %v1958 = vand.u32 %v89, 4294901760
    %v1959 = vsub.f32 %v89, %v1958
    %1960 = vmatpush1.msra.mxu0 %v1959
    %1961 = vmatprep.subr.mxu0 0.0
    %v1962 = vand.u32 %v93, 4294901760
    %v1963 = vsub.f32 %v93, %v1962
    %1964 = vmatpush1.msra.mxu0 %v1963
    %1965 = vmatprep.subr.mxu0 0.0
    %v1966 = vand.u32 %v97, 4294901760
    %v1967 = vsub.f32 %v97, %v1966
    %1968 = vmatpush1.msra.mxu0 %v1967
    %1969 = vmatprep.subr.mxu0 0.0
    %v1970 = vand.u32 %v101, 4294901760
    %v1971 = vsub.f32 %v101, %v1970
    %1972 = vmatpush1.msra.mxu0 %v1971
    %1973 = vmatprep.subr.mxu0 0.0
    %v1974 = vand.u32 %v105, 4294901760
    %v1975 = vsub.f32 %v105, %v1974
    %1976 = vmatpush1.msra.mxu0 %v1975
    %1977 = vmatprep.subr.mxu0 0.0
    %v1978 = vand.u32 %v109, 4294901760
    %v1979 = vsub.f32 %v109, %v1978
    %1980 = vmatpush1.msra.mxu0 %v1979
    %1981 = vmatprep.subr.mxu0 0.0
    %1982 = vmatpush1.msra.mxu0 0.0
    %1983 = vmatprep.subr.mxu0 0.0
    %1984 = vmatpush1.msra.mxu0 0.0
    %1985 = vmatprep.subr.mxu0 0.0
    %1986 = vmatpush1.msra.mxu0 0.0
    %1987 = vmatprep.subr.mxu0 0.0
    %1988 = vmatpush1.msra.mxu0 0.0
    %1989 = vmatprep.subr.mxu0 0.0
    %1990 = vmatpush1.msra.mxu0 0.0
    %1991 = vmatprep.subr.mxu0 0.0
    %1992 = vmatpush1.msra.mxu0 0.0
    %1993 = vmatprep.subr.mxu0 0.0
    %1994 = vmatpush1.msra.mxu0 0.0
    %1995 = vmatprep.subr.mxu0 0.0
    %1996 = vmatpush1.msra.mxu0 0.0
    %1997 = vmatprep.subr.mxu0 0.0
    %1998 = vmatpush1.msra.mxu0 0.0
    %1999 = vmatprep.subr.mxu0 0.0
    %2000 = vmatpush1.msra.mxu0 0.0
    %2001 = vmatprep.subr.mxu0 0.0
    %2002 = vmatpush1.msra.mxu0 0.0
    %2003 = vmatprep.subr.mxu0 0.0
    %2004 = vmatpush1.msra.mxu0 0.0
    %2005 = vmatprep.subr.mxu0 0.0
    %2006 = vmatpush1.msra.mxu0 0.0
    %2007 = vmatprep.subr.mxu0 0.0
    %2008 = vmatpush1.msra.mxu0 0.0
    %2009 = vmatprep.subr.mxu0 0.0
    %2010 = vmatpush1.msra.mxu0 0.0
    %2011 = vmatprep.subr.mxu0 0.0
    %2012 = vmatpush1.msra.mxu0 0.0
    %2013 = vmatprep.mubr.f32.mxu0 0.0
    %v2014 = vand.u32 %v1670, 4294901760
    %v2015 = vsub.f32 %v1670, %v2014
    %2016 = vmatmul.mubr.f32.gmra.mrb[0].mxu0 %v2015
    %v2017 = vpop.f32.mrb[0].mxu0
    %v2018 = vadd.f32 %v1914, %v2017
    %v2019 = vpop.f32.mrb[0].mxu0
    %2020 = vdwg.mxu0
    %2021 = vmatprep.subr.mxu0 0.0
    %v2022 = vand.u32 %v49, 4294901760
    %2023 = vmatpush1.msra.mxu0 %v2022
    %2024 = vmatprep.subr.mxu0 0.0
    %v2025 = vand.u32 %v53, 4294901760
    %2026 = vmatpush1.msra.mxu0 %v2025
    %2027 = vmatprep.subr.mxu0 0.0
    %v2028 = vand.u32 %v57, 4294901760
    %2029 = vmatpush1.msra.mxu0 %v2028
    %2030 = vmatprep.subr.mxu0 0.0
    %v2031 = vand.u32 %v61, 4294901760
    %2032 = vmatpush1.msra.mxu0 %v2031
    %2033 = vmatprep.subr.mxu0 0.0
    %v2034 = vand.u32 %v65, 4294901760
    %2035 = vmatpush1.msra.mxu0 %v2034
    %2036 = vmatprep.subr.mxu0 0.0
    %v2037 = vand.u32 %v69, 4294901760
    %2038 = vmatpush1.msra.mxu0 %v2037
    %2039 = vmatprep.subr.mxu0 0.0
    %v2040 = vand.u32 %v73, 4294901760
    %2041 = vmatpush1.msra.mxu0 %v2040
    %2042 = vmatprep.subr.mxu0 0.0
    %v2043 = vand.u32 %v77, 4294901760
    %2044 = vmatpush1.msra.mxu0 %v2043
    %2045 = vmatprep.subr.mxu0 0.0
    %v2046 = vand.u32 %v81, 4294901760
    %2047 = vmatpush1.msra.mxu0 %v2046
    %2048 = vmatprep.subr.mxu0 0.0
    %v2049 = vand.u32 %v85, 4294901760
    %2050 = vmatpush1.msra.mxu0 %v2049
    %2051 = vmatprep.subr.mxu0 0.0
    %v2052 = vand.u32 %v89, 4294901760
    %2053 = vmatpush1.msra.mxu0 %v2052
    %2054 = vmatprep.subr.mxu0 0.0
    %v2055 = vand.u32 %v93, 4294901760
    %2056 = vmatpush1.msra.mxu0 %v2055
    %2057 = vmatprep.subr.mxu0 0.0
    %v2058 = vand.u32 %v97, 4294901760
    %2059 = vmatpush1.msra.mxu0 %v2058
    %2060 = vmatprep.subr.mxu0 0.0
    %v2061 = vand.u32 %v101, 4294901760
    %2062 = vmatpush1.msra.mxu0 %v2061
    %2063 = vmatprep.subr.mxu0 0.0
    %v2064 = vand.u32 %v105, 4294901760
    %2065 = vmatpush1.msra.mxu0 %v2064
    %2066 = vmatprep.subr.mxu0 0.0
    %v2067 = vand.u32 %v109, 4294901760
    %2068 = vmatpush1.msra.mxu0 %v2067
    %2069 = vmatprep.subr.mxu0 0.0
    %2070 = vmatpush1.msra.mxu0 0.0
    %2071 = vmatprep.subr.mxu0 0.0
    %2072 = vmatpush1.msra.mxu0 0.0
    %2073 = vmatprep.subr.mxu0 0.0
    %2074 = vmatpush1.msra.mxu0 0.0
    %2075 = vmatprep.subr.mxu0 0.0
    %2076 = vmatpush1.msra.mxu0 0.0
    %2077 = vmatprep.subr.mxu0 0.0
    %2078 = vmatpush1.msra.mxu0 0.0
    %2079 = vmatprep.subr.mxu0 0.0
    %2080 = vmatpush1.msra.mxu0 0.0
    %2081 = vmatprep.subr.mxu0 0.0
    %2082 = vmatpush1.msra.mxu0 0.0
    %2083 = vmatprep.subr.mxu0 0.0
    %2084 = vmatpush1.msra.mxu0 0.0
    %2085 = vmatprep.subr.mxu0 0.0
    %2086 = vmatpush1.msra.mxu0 0.0
    %2087 = vmatprep.subr.mxu0 0.0
    %2088 = vmatpush1.msra.mxu0 0.0
    %2089 = vmatprep.subr.mxu0 0.0
    %2090 = vmatpush1.msra.mxu0 0.0
    %2091 = vmatprep.subr.mxu0 0.0
    %2092 = vmatpush1.msra.mxu0 0.0
    %2093 = vmatprep.subr.mxu0 0.0
    %2094 = vmatpush1.msra.mxu0 0.0
    %2095 = vmatprep.subr.mxu0 0.0
    %2096 = vmatpush1.msra.mxu0 0.0
    %2097 = vmatprep.subr.mxu0 0.0
    %2098 = vmatpush1.msra.mxu0 0.0
    %2099 = vmatprep.subr.mxu0 0.0
    %2100 = vmatpush1.msra.mxu0 0.0
    %2101 = vmatprep.mubr.f32.mxu0 0.0
    %v2102 = vand.u32 %v1670, 4294901760
    %v2103 = vsub.f32 %v1670, %v2102
    %v2104 = vand.u32 %v2103, 4294901760
    %2105 = vmatmul.mubr.f32.gmra.mrb[0].mxu0 %v2104
    %v2106 = vpop.f32.mrb[0].mxu0
    %v2107 = vadd.f32 %v2018, %v2106
    %v2108 = vpop.f32.mrb[0].mxu0
    %2109 = vdwg.mxu0
    %2110 = vmatprep.subr.mxu0 0.0
    %v2111 = vand.u32 %v49, 4294901760
    %v2112 = vsub.f32 %v49, %v2111
    %v2113 = vand.u32 %v2112, 4294901760
    %2114 = vmatpush1.msra.mxu0 %v2113
    %2115 = vmatprep.subr.mxu0 0.0
    %v2116 = vand.u32 %v53, 4294901760
    %v2117 = vsub.f32 %v53, %v2116
    %v2118 = vand.u32 %v2117, 4294901760
    %2119 = vmatpush1.msra.mxu0 %v2118
    %2120 = vmatprep.subr.mxu0 0.0
    %v2121 = vand.u32 %v57, 4294901760
    %v2122 = vsub.f32 %v57, %v2121
    %v2123 = vand.u32 %v2122, 4294901760
    %2124 = vmatpush1.msra.mxu0 %v2123
    %2125 = vmatprep.subr.mxu0 0.0
    %v2126 = vand.u32 %v61, 4294901760
    %v2127 = vsub.f32 %v61, %v2126
    %v2128 = vand.u32 %v2127, 4294901760
    %2129 = vmatpush1.msra.mxu0 %v2128
    %2130 = vmatprep.subr.mxu0 0.0
    %v2131 = vand.u32 %v65, 4294901760
    %v2132 = vsub.f32 %v65, %v2131
    %v2133 = vand.u32 %v2132, 4294901760
    %2134 = vmatpush1.msra.mxu0 %v2133
    %2135 = vmatprep.subr.mxu0 0.0
    %v2136 = vand.u32 %v69, 4294901760
    %v2137 = vsub.f32 %v69, %v2136
    %v2138 = vand.u32 %v2137, 4294901760
    %2139 = vmatpush1.msra.mxu0 %v2138
    %2140 = vmatprep.subr.mxu0 0.0
    %v2141 = vand.u32 %v73, 4294901760
    %v2142 = vsub.f32 %v73, %v2141
    %v2143 = vand.u32 %v2142, 4294901760
    %2144 = vmatpush1.msra.mxu0 %v2143
    %2145 = vmatprep.subr.mxu0 0.0
    %v2146 = vand.u32 %v77, 4294901760
    %v2147 = vsub.f32 %v77, %v2146
    %v2148 = vand.u32 %v2147, 4294901760
    %2149 = vmatpush1.msra.mxu0 %v2148
    %2150 = vmatprep.subr.mxu0 0.0
    %v2151 = vand.u32 %v81, 4294901760
    %v2152 = vsub.f32 %v81, %v2151
    %v2153 = vand.u32 %v2152, 4294901760
    %2154 = vmatpush1.msra.mxu0 %v2153
    %2155 = vmatprep.subr.mxu0 0.0
    %v2156 = vand.u32 %v85, 4294901760
    %v2157 = vsub.f32 %v85, %v2156
    %v2158 = vand.u32 %v2157, 4294901760
    %2159 = vmatpush1.msra.mxu0 %v2158
    %2160 = vmatprep.subr.mxu0 0.0
    %v2161 = vand.u32 %v89, 4294901760
    %v2162 = vsub.f32 %v89, %v2161
    %v2163 = vand.u32 %v2162, 4294901760
    %2164 = vmatpush1.msra.mxu0 %v2163
    %2165 = vmatprep.subr.mxu0 0.0
    %v2166 = vand.u32 %v93, 4294901760
    %v2167 = vsub.f32 %v93, %v2166
    %v2168 = vand.u32 %v2167, 4294901760
    %2169 = vmatpush1.msra.mxu0 %v2168
    %2170 = vmatprep.subr.mxu0 0.0
    %v2171 = vand.u32 %v97, 4294901760
    %v2172 = vsub.f32 %v97, %v2171
    %v2173 = vand.u32 %v2172, 4294901760
    %2174 = vmatpush1.msra.mxu0 %v2173
    %2175 = vmatprep.subr.mxu0 0.0
    %v2176 = vand.u32 %v101, 4294901760
    %v2177 = vsub.f32 %v101, %v2176
    %v2178 = vand.u32 %v2177, 4294901760
    %2179 = vmatpush1.msra.mxu0 %v2178
    %2180 = vmatprep.subr.mxu0 0.0
    %v2181 = vand.u32 %v105, 4294901760
    %v2182 = vsub.f32 %v105, %v2181
    %v2183 = vand.u32 %v2182, 4294901760
    %2184 = vmatpush1.msra.mxu0 %v2183
    %2185 = vmatprep.subr.mxu0 0.0
    %v2186 = vand.u32 %v109, 4294901760
    %v2187 = vsub.f32 %v109, %v2186
    %v2188 = vand.u32 %v2187, 4294901760
    %2189 = vmatpush1.msra.mxu0 %v2188
    %2190 = vmatprep.subr.mxu0 0.0
    %2191 = vmatpush1.msra.mxu0 0.0
    %2192 = vmatprep.subr.mxu0 0.0
    %2193 = vmatpush1.msra.mxu0 0.0
    %2194 = vmatprep.subr.mxu0 0.0
    %2195 = vmatpush1.msra.mxu0 0.0
    %2196 = vmatprep.subr.mxu0 0.0
    %2197 = vmatpush1.msra.mxu0 0.0
    %2198 = vmatprep.subr.mxu0 0.0
    %2199 = vmatpush1.msra.mxu0 0.0
    %2200 = vmatprep.subr.mxu0 0.0
    %2201 = vmatpush1.msra.mxu0 0.0
    %2202 = vmatprep.subr.mxu0 0.0
    %2203 = vmatpush1.msra.mxu0 0.0
    %2204 = vmatprep.subr.mxu0 0.0
    %2205 = vmatpush1.msra.mxu0 0.0
    %2206 = vmatprep.subr.mxu0 0.0
    %2207 = vmatpush1.msra.mxu0 0.0
    %2208 = vmatprep.subr.mxu0 0.0
    %2209 = vmatpush1.msra.mxu0 0.0
    %2210 = vmatprep.subr.mxu0 0.0
    %2211 = vmatpush1.msra.mxu0 0.0
    %2212 = vmatprep.subr.mxu0 0.0
    %2213 = vmatpush1.msra.mxu0 0.0
    %2214 = vmatprep.subr.mxu0 0.0
    %2215 = vmatpush1.msra.mxu0 0.0
    %2216 = vmatprep.subr.mxu0 0.0
    %2217 = vmatpush1.msra.mxu0 0.0
    %2218 = vmatprep.subr.mxu0 0.0
    %2219 = vmatpush1.msra.mxu0 0.0
    %2220 = vmatprep.subr.mxu0 0.0
    %2221 = vmatpush1.msra.mxu0 0.0
    %2222 = vmatprep.mubr.f32.mxu0 0.0
    %v2223 = vand.u32 %v1670, 4294901760
    %2224 = vmatmul.mubr.f32.gmra.mrb[0].mxu0 %v2223
    %v2225 = vpop.f32.mrb[0].mxu0
    %v2226 = vadd.f32 %v2107, %v2225
    %v2227 = vpop.f32.mrb[0].mxu0
    %2228 = vdwg.mxu0
    %2229 = vmatprep.subr.mxu0 0.0
    %v2230 = vand.u32 %v49, 4294901760
    %2231 = vmatpush1.msra.mxu0 %v2230
    %2232 = vmatprep.subr.mxu0 0.0
    %v2233 = vand.u32 %v53, 4294901760
    %2234 = vmatpush1.msra.mxu0 %v2233
    %2235 = vmatprep.subr.mxu0 0.0
    %v2236 = vand.u32 %v57, 4294901760
    %2237 = vmatpush1.msra.mxu0 %v2236
    %2238 = vmatprep.subr.mxu0 0.0
    %v2239 = vand.u32 %v61, 4294901760
    %2240 = vmatpush1.msra.mxu0 %v2239
    %2241 = vmatprep.subr.mxu0 0.0
    %v2242 = vand.u32 %v65, 4294901760
    %2243 = vmatpush1.msra.mxu0 %v2242
    %2244 = vmatprep.subr.mxu0 0.0
    %v2245 = vand.u32 %v69, 4294901760
    %2246 = vmatpush1.msra.mxu0 %v2245
    %2247 = vmatprep.subr.mxu0 0.0
    %v2248 = vand.u32 %v73, 4294901760
    %2249 = vmatpush1.msra.mxu0 %v2248
    %2250 = vmatprep.subr.mxu0 0.0
    %v2251 = vand.u32 %v77, 4294901760
    %2252 = vmatpush1.msra.mxu0 %v2251
    %2253 = vmatprep.subr.mxu0 0.0
    %v2254 = vand.u32 %v81, 4294901760
    %2255 = vmatpush1.msra.mxu0 %v2254
    %2256 = vmatprep.subr.mxu0 0.0
    %v2257 = vand.u32 %v85, 4294901760
    %2258 = vmatpush1.msra.mxu0 %v2257
    %2259 = vmatprep.subr.mxu0 0.0
    %v2260 = vand.u32 %v89, 4294901760
    %2261 = vmatpush1.msra.mxu0 %v2260
    %2262 = vmatprep.subr.mxu0 0.0
    %v2263 = vand.u32 %v93, 4294901760
    %2264 = vmatpush1.msra.mxu0 %v2263
    %2265 = vmatprep.subr.mxu0 0.0
    %v2266 = vand.u32 %v97, 4294901760
    %2267 = vmatpush1.msra.mxu0 %v2266
    %2268 = vmatprep.subr.mxu0 0.0
    %v2269 = vand.u32 %v101, 4294901760
    %2270 = vmatpush1.msra.mxu0 %v2269
    %2271 = vmatprep.subr.mxu0 0.0
    %v2272 = vand.u32 %v105, 4294901760
    %2273 = vmatpush1.msra.mxu0 %v2272
    %2274 = vmatprep.subr.mxu0 0.0
    %v2275 = vand.u32 %v109, 4294901760
    %2276 = vmatpush1.msra.mxu0 %v2275
    %2277 = vmatprep.subr.mxu0 0.0
    %2278 = vmatpush1.msra.mxu0 0.0
    %2279 = vmatprep.subr.mxu0 0.0
    %2280 = vmatpush1.msra.mxu0 0.0
    %2281 = vmatprep.subr.mxu0 0.0
    %2282 = vmatpush1.msra.mxu0 0.0
    %2283 = vmatprep.subr.mxu0 0.0
    %2284 = vmatpush1.msra.mxu0 0.0
    %2285 = vmatprep.subr.mxu0 0.0
    %2286 = vmatpush1.msra.mxu0 0.0
    %2287 = vmatprep.subr.mxu0 0.0
    %2288 = vmatpush1.msra.mxu0 0.0
    %2289 = vmatprep.subr.mxu0 0.0
    %2290 = vmatpush1.msra.mxu0 0.0
    %2291 = vmatprep.subr.mxu0 0.0
    %2292 = vmatpush1.msra.mxu0 0.0
    %2293 = vmatprep.subr.mxu0 0.0
    %2294 = vmatpush1.msra.mxu0 0.0
    %2295 = vmatprep.subr.mxu0 0.0
    %2296 = vmatpush1.msra.mxu0 0.0
    %2297 = vmatprep.subr.mxu0 0.0
    %2298 = vmatpush1.msra.mxu0 0.0
    %2299 = vmatprep.subr.mxu0 0.0
    %2300 = vmatpush1.msra.mxu0 0.0
    %2301 = vmatprep.subr.mxu0 0.0
    %2302 = vmatpush1.msra.mxu0 0.0
    %2303 = vmatprep.subr.mxu0 0.0
    %2304 = vmatpush1.msra.mxu0 0.0
    %2305 = vmatprep.subr.mxu0 0.0
    %2306 = vmatpush1.msra.mxu0 0.0
    %2307 = vmatprep.subr.mxu0 0.0
    %2308 = vmatpush1.msra.mxu0 0.0
    %2309 = vmatprep.mubr.f32.mxu0 0.0
    %v2310 = vand.u32 %v1670, 4294901760
    %2311 = vmatmul.mubr.f32.gmra.mrb[0].mxu0 %v2310
    %v2312 = vpop.f32.mrb[0].mxu0
    %v2313 = vadd.f32 %v2226, %v2312
    %v2314 = vpop.f32.mrb[0].mxu0
    %2315 = vdwg.mxu0
    %v2316 = vmax.f32 %v2313, 0.0
    %v2317 = vlaneseq
    %v2318 = vshrl.u32 %v2317, 7
    %v2319 = vsub.s32 3, %v2318
    %v2320 = vrot.slane %v111, %v2319
    %2321 = vmatprep.subr.mxu0 0.0
    %v2322 = vand.u32 %v50, 4294901760
    %2323 = vmatpush1.msra.mxu0 %v2322
    %2324 = vmatprep.subr.mxu0 0.0
    %v2325 = vand.u32 %v54, 4294901760
    %2326 = vmatpush1.msra.mxu0 %v2325
    %2327 = vmatprep.subr.mxu0 0.0
    %v2328 = vand.u32 %v58, 4294901760
    %2329 = vmatpush1.msra.mxu0 %v2328
    %2330 = vmatprep.subr.mxu0 0.0
    %v2331 = vand.u32 %v62, 4294901760
    %2332 = vmatpush1.msra.mxu0 %v2331
    %2333 = vmatprep.subr.mxu0 0.0
    %v2334 = vand.u32 %v66, 4294901760
    %2335 = vmatpush1.msra.mxu0 %v2334
    %2336 = vmatprep.subr.mxu0 0.0
    %v2337 = vand.u32 %v70, 4294901760
    %2338 = vmatpush1.msra.mxu0 %v2337
    %2339 = vmatprep.subr.mxu0 0.0
    %v2340 = vand.u32 %v74, 4294901760
    %2341 = vmatpush1.msra.mxu0 %v2340
    %2342 = vmatprep.subr.mxu0 0.0
    %v2343 = vand.u32 %v78, 4294901760
    %2344 = vmatpush1.msra.mxu0 %v2343
    %2345 = vmatprep.subr.mxu0 0.0
    %v2346 = vand.u32 %v82, 4294901760
    %2347 = vmatpush1.msra.mxu0 %v2346
    %2348 = vmatprep.subr.mxu0 0.0
    %v2349 = vand.u32 %v86, 4294901760
    %2350 = vmatpush1.msra.mxu0 %v2349
    %2351 = vmatprep.subr.mxu0 0.0
    %v2352 = vand.u32 %v90, 4294901760
    %2353 = vmatpush1.msra.mxu0 %v2352
    %2354 = vmatprep.subr.mxu0 0.0
    %v2355 = vand.u32 %v94, 4294901760
    %2356 = vmatpush1.msra.mxu0 %v2355
    %2357 = vmatprep.subr.mxu0 0.0
    %v2358 = vand.u32 %v98, 4294901760
    %2359 = vmatpush1.msra.mxu0 %v2358
    %2360 = vmatprep.subr.mxu0 0.0
    %v2361 = vand.u32 %v102, 4294901760
    %2362 = vmatpush1.msra.mxu0 %v2361
    %2363 = vmatprep.subr.mxu0 0.0
    %v2364 = vand.u32 %v106, 4294901760
    %2365 = vmatpush1.msra.mxu0 %v2364
    %2366 = vmatprep.subr.mxu0 0.0
    %v2367 = vand.u32 %v110, 4294901760
    %2368 = vmatpush1.msra.mxu0 %v2367
    %2369 = vmatprep.subr.mxu0 0.0
    %2370 = vmatpush1.msra.mxu0 0.0
    %2371 = vmatprep.subr.mxu0 0.0
    %2372 = vmatpush1.msra.mxu0 0.0
    %2373 = vmatprep.subr.mxu0 0.0
    %2374 = vmatpush1.msra.mxu0 0.0
    %2375 = vmatprep.subr.mxu0 0.0
    %2376 = vmatpush1.msra.mxu0 0.0
    %2377 = vmatprep.subr.mxu0 0.0
    %2378 = vmatpush1.msra.mxu0 0.0
    %2379 = vmatprep.subr.mxu0 0.0
    %2380 = vmatpush1.msra.mxu0 0.0
    %2381 = vmatprep.subr.mxu0 0.0
    %2382 = vmatpush1.msra.mxu0 0.0
    %2383 = vmatprep.subr.mxu0 0.0
    %2384 = vmatpush1.msra.mxu0 0.0
    %2385 = vmatprep.subr.mxu0 0.0
    %2386 = vmatpush1.msra.mxu0 0.0
    %2387 = vmatprep.subr.mxu0 0.0
    %2388 = vmatpush1.msra.mxu0 0.0
    %2389 = vmatprep.subr.mxu0 0.0
    %2390 = vmatpush1.msra.mxu0 0.0
    %2391 = vmatprep.subr.mxu0 0.0
    %2392 = vmatpush1.msra.mxu0 0.0
    %2393 = vmatprep.subr.mxu0 0.0
    %2394 = vmatpush1.msra.mxu0 0.0
    %2395 = vmatprep.subr.mxu0 0.0
    %2396 = vmatpush1.msra.mxu0 0.0
    %2397 = vmatprep.subr.mxu0 0.0
    %2398 = vmatpush1.msra.mxu0 0.0
    %2399 = vmatprep.subr.mxu0 0.0
    %2400 = vmatpush1.msra.mxu0 0.0
    %2401 = vmatprep.mubr.f32.mxu0 0.0
    %v2402 = vand.u32 %v2316, 4294901760
    %v2403 = vsub.f32 %v2316, %v2402
    %v2404 = vand.u32 %v2403, 4294901760
    %v2405 = vsub.f32 %v2403, %v2404
    %v2406 = vand.u32 %v2405, 4294901760
    %2407 = vmatmul.mubr.f32.gmra.mrb[0].mxu0 %v2406
    %v2408 = vpop.f32.mrb[0].mxu0
    %v2409 = vadd.f32 %v2320, %v2408
    %v2410 = vpop.f32.mrb[0].mxu0
    %2411 = vdwg.mxu0
    %2412 = vmatprep.subr.mxu0 0.0
    %v2413 = vand.u32 %v50, 4294901760
    %v2414 = vsub.f32 %v50, %v2413
    %v2415 = vand.u32 %v2414, 4294901760
    %v2416 = vsub.f32 %v2414, %v2415
    %v2417 = vand.u32 %v2416, 4294901760
    %2418 = vmatpush1.msra.mxu0 %v2417
    %2419 = vmatprep.subr.mxu0 0.0
    %v2420 = vand.u32 %v54, 4294901760
    %v2421 = vsub.f32 %v54, %v2420
    %v2422 = vand.u32 %v2421, 4294901760
    %v2423 = vsub.f32 %v2421, %v2422
    %v2424 = vand.u32 %v2423, 4294901760
    %2425 = vmatpush1.msra.mxu0 %v2424
    %2426 = vmatprep.subr.mxu0 0.0
    %v2427 = vand.u32 %v58, 4294901760
    %v2428 = vsub.f32 %v58, %v2427
    %v2429 = vand.u32 %v2428, 4294901760
    %v2430 = vsub.f32 %v2428, %v2429
    %v2431 = vand.u32 %v2430, 4294901760
    %2432 = vmatpush1.msra.mxu0 %v2431
    %2433 = vmatprep.subr.mxu0 0.0
    %v2434 = vand.u32 %v62, 4294901760
    %v2435 = vsub.f32 %v62, %v2434
    %v2436 = vand.u32 %v2435, 4294901760
    %v2437 = vsub.f32 %v2435, %v2436
    %v2438 = vand.u32 %v2437, 4294901760
    %2439 = vmatpush1.msra.mxu0 %v2438
    %2440 = vmatprep.subr.mxu0 0.0
    %v2441 = vand.u32 %v66, 4294901760
    %v2442 = vsub.f32 %v66, %v2441
    %v2443 = vand.u32 %v2442, 4294901760
    %v2444 = vsub.f32 %v2442, %v2443
    %v2445 = vand.u32 %v2444, 4294901760
    %2446 = vmatpush1.msra.mxu0 %v2445
    %2447 = vmatprep.subr.mxu0 0.0
    %v2448 = vand.u32 %v70, 4294901760
    %v2449 = vsub.f32 %v70, %v2448
    %v2450 = vand.u32 %v2449, 4294901760
    %v2451 = vsub.f32 %v2449, %v2450
    %v2452 = vand.u32 %v2451, 4294901760
    %2453 = vmatpush1.msra.mxu0 %v2452
    %2454 = vmatprep.subr.mxu0 0.0
    %v2455 = vand.u32 %v74, 4294901760
    %v2456 = vsub.f32 %v74, %v2455
    %v2457 = vand.u32 %v2456, 4294901760
    %v2458 = vsub.f32 %v2456, %v2457
    %v2459 = vand.u32 %v2458, 4294901760
    %2460 = vmatpush1.msra.mxu0 %v2459
    %2461 = vmatprep.subr.mxu0 0.0
    %v2462 = vand.u32 %v78, 4294901760
    %v2463 = vsub.f32 %v78, %v2462
    %v2464 = vand.u32 %v2463, 4294901760
    %v2465 = vsub.f32 %v2463, %v2464
    %v2466 = vand.u32 %v2465, 4294901760
    %2467 = vmatpush1.msra.mxu0 %v2466
    %2468 = vmatprep.subr.mxu0 0.0
    %v2469 = vand.u32 %v82, 4294901760
    %v2470 = vsub.f32 %v82, %v2469
    %v2471 = vand.u32 %v2470, 4294901760
    %v2472 = vsub.f32 %v2470, %v2471
    %v2473 = vand.u32 %v2472, 4294901760
    %2474 = vmatpush1.msra.mxu0 %v2473
    %2475 = vmatprep.subr.mxu0 0.0
    %v2476 = vand.u32 %v86, 4294901760
    %v2477 = vsub.f32 %v86, %v2476
    %v2478 = vand.u32 %v2477, 4294901760
    %v2479 = vsub.f32 %v2477, %v2478
    %v2480 = vand.u32 %v2479, 4294901760
    %2481 = vmatpush1.msra.mxu0 %v2480
    %2482 = vmatprep.subr.mxu0 0.0
    %v2483 = vand.u32 %v90, 4294901760
    %v2484 = vsub.f32 %v90, %v2483
    %v2485 = vand.u32 %v2484, 4294901760
    %v2486 = vsub.f32 %v2484, %v2485
    %v2487 = vand.u32 %v2486, 4294901760
    %2488 = vmatpush1.msra.mxu0 %v2487
    %2489 = vmatprep.subr.mxu0 0.0
    %v2490 = vand.u32 %v94, 4294901760
    %v2491 = vsub.f32 %v94, %v2490
    %v2492 = vand.u32 %v2491, 4294901760
    %v2493 = vsub.f32 %v2491, %v2492
    %v2494 = vand.u32 %v2493, 4294901760
    %2495 = vmatpush1.msra.mxu0 %v2494
    %2496 = vmatprep.subr.mxu0 0.0
    %v2497 = vand.u32 %v98, 4294901760
    %v2498 = vsub.f32 %v98, %v2497
    %v2499 = vand.u32 %v2498, 4294901760
    %v2500 = vsub.f32 %v2498, %v2499
    %v2501 = vand.u32 %v2500, 4294901760
    %2502 = vmatpush1.msra.mxu0 %v2501
    %2503 = vmatprep.subr.mxu0 0.0
    %v2504 = vand.u32 %v102, 4294901760
    %v2505 = vsub.f32 %v102, %v2504
    %v2506 = vand.u32 %v2505, 4294901760
    %v2507 = vsub.f32 %v2505, %v2506
    %v2508 = vand.u32 %v2507, 4294901760
    %2509 = vmatpush1.msra.mxu0 %v2508
    %2510 = vmatprep.subr.mxu0 0.0
    %v2511 = vand.u32 %v106, 4294901760
    %v2512 = vsub.f32 %v106, %v2511
    %v2513 = vand.u32 %v2512, 4294901760
    %v2514 = vsub.f32 %v2512, %v2513
    %v2515 = vand.u32 %v2514, 4294901760
    %2516 = vmatpush1.msra.mxu0 %v2515
    %2517 = vmatprep.subr.mxu0 0.0
    %v2518 = vand.u32 %v110, 4294901760
    %v2519 = vsub.f32 %v110, %v2518
    %v2520 = vand.u32 %v2519, 4294901760
    %v2521 = vsub.f32 %v2519, %v2520
    %v2522 = vand.u32 %v2521, 4294901760
    %2523 = vmatpush1.msra.mxu0 %v2522
    %2524 = vmatprep.subr.mxu0 0.0
    %2525 = vmatpush1.msra.mxu0 0.0
    %2526 = vmatprep.subr.mxu0 0.0
    %2527 = vmatpush1.msra.mxu0 0.0
    %2528 = vmatprep.subr.mxu0 0.0
    %2529 = vmatpush1.msra.mxu0 0.0
    %2530 = vmatprep.subr.mxu0 0.0
    %2531 = vmatpush1.msra.mxu0 0.0
    %2532 = vmatprep.subr.mxu0 0.0
    %2533 = vmatpush1.msra.mxu0 0.0
    %2534 = vmatprep.subr.mxu0 0.0
    %2535 = vmatpush1.msra.mxu0 0.0
    %2536 = vmatprep.subr.mxu0 0.0
    %2537 = vmatpush1.msra.mxu0 0.0
    %2538 = vmatprep.subr.mxu0 0.0
    %2539 = vmatpush1.msra.mxu0 0.0
    %2540 = vmatprep.subr.mxu0 0.0
    %2541 = vmatpush1.msra.mxu0 0.0
    %2542 = vmatprep.subr.mxu0 0.0
    %2543 = vmatpush1.msra.mxu0 0.0
    %2544 = vmatprep.subr.mxu0 0.0
    %2545 = vmatpush1.msra.mxu0 0.0
    %2546 = vmatprep.subr.mxu0 0.0
    %2547 = vmatpush1.msra.mxu0 0.0
    %2548 = vmatprep.subr.mxu0 0.0
    %2549 = vmatpush1.msra.mxu0 0.0
    %2550 = vmatprep.subr.mxu0 0.0
    %2551 = vmatpush1.msra.mxu0 0.0
    %2552 = vmatprep.subr.mxu0 0.0
    %2553 = vmatpush1.msra.mxu0 0.0
    %2554 = vmatprep.subr.mxu0 0.0
    %2555 = vmatpush1.msra.mxu0 0.0
    %2556 = vmatprep.mubr.f32.mxu0 0.0
    %v2557 = vand.u32 %v2316, 4294901760
    %2558 = vmatmul.mubr.f32.gmra.mrb[0].mxu0 %v2557
    %v2559 = vpop.f32.mrb[0].mxu0
    %v2560 = vadd.f32 %v2409, %v2559
    %v2561 = vpop.f32.mrb[0].mxu0
    %2562 = vdwg.mxu0
    %2563 = vmatprep.subr.mxu0 0.0
    %v2564 = vand.u32 %v50, 4294901760
    %v2565 = vsub.f32 %v50, %v2564
    %2566 = vmatpush1.msra.mxu0 %v2565
    %2567 = vmatprep.subr.mxu0 0.0
    %v2568 = vand.u32 %v54, 4294901760
    %v2569 = vsub.f32 %v54, %v2568
    %2570 = vmatpush1.msra.mxu0 %v2569
    %2571 = vmatprep.subr.mxu0 0.0
    %v2572 = vand.u32 %v58, 4294901760
    %v2573 = vsub.f32 %v58, %v2572
    %2574 = vmatpush1.msra.mxu0 %v2573
    %2575 = vmatprep.subr.mxu0 0.0
    %v2576 = vand.u32 %v62, 4294901760
    %v2577 = vsub.f32 %v62, %v2576
    %2578 = vmatpush1.msra.mxu0 %v2577
    %2579 = vmatprep.subr.mxu0 0.0
    %v2580 = vand.u32 %v66, 4294901760
    %v2581 = vsub.f32 %v66, %v2580
    %2582 = vmatpush1.msra.mxu0 %v2581
    %2583 = vmatprep.subr.mxu0 0.0
    %v2584 = vand.u32 %v70, 4294901760
    %v2585 = vsub.f32 %v70, %v2584
    %2586 = vmatpush1.msra.mxu0 %v2585
    %2587 = vmatprep.subr.mxu0 0.0
    %v2588 = vand.u32 %v74, 4294901760
    %v2589 = vsub.f32 %v74, %v2588
    %2590 = vmatpush1.msra.mxu0 %v2589
    %2591 = vmatprep.subr.mxu0 0.0
    %v2592 = vand.u32 %v78, 4294901760
    %v2593 = vsub.f32 %v78, %v2592
    %2594 = vmatpush1.msra.mxu0 %v2593
    %2595 = vmatprep.subr.mxu0 0.0
    %v2596 = vand.u32 %v82, 4294901760
    %v2597 = vsub.f32 %v82, %v2596
    %2598 = vmatpush1.msra.mxu0 %v2597
    %2599 = vmatprep.subr.mxu0 0.0
    %v2600 = vand.u32 %v86, 4294901760
    %v2601 = vsub.f32 %v86, %v2600
    %2602 = vmatpush1.msra.mxu0 %v2601
    %2603 = vmatprep.subr.mxu0 0.0
    %v2604 = vand.u32 %v90, 4294901760
    %v2605 = vsub.f32 %v90, %v2604
    %2606 = vmatpush1.msra.mxu0 %v2605
    %2607 = vmatprep.subr.mxu0 0.0
    %v2608 = vand.u32 %v94, 4294901760
    %v2609 = vsub.f32 %v94, %v2608
    %2610 = vmatpush1.msra.mxu0 %v2609
    %2611 = vmatprep.subr.mxu0 0.0
    %v2612 = vand.u32 %v98, 4294901760
    %v2613 = vsub.f32 %v98, %v2612
    %2614 = vmatpush1.msra.mxu0 %v2613
    %2615 = vmatprep.subr.mxu0 0.0
    %v2616 = vand.u32 %v102, 4294901760
    %v2617 = vsub.f32 %v102, %v2616
    %2618 = vmatpush1.msra.mxu0 %v2617
    %2619 = vmatprep.subr.mxu0 0.0
    %v2620 = vand.u32 %v106, 4294901760
    %v2621 = vsub.f32 %v106, %v2620
    %2622 = vmatpush1.msra.mxu0 %v2621
    %2623 = vmatprep.subr.mxu0 0.0
    %v2624 = vand.u32 %v110, 4294901760
    %v2625 = vsub.f32 %v110, %v2624
    %2626 = vmatpush1.msra.mxu0 %v2625
    %2627 = vmatprep.subr.mxu0 0.0
    %2628 = vmatpush1.msra.mxu0 0.0
    %2629 = vmatprep.subr.mxu0 0.0
    %2630 = vmatpush1.msra.mxu0 0.0
    %2631 = vmatprep.subr.mxu0 0.0
    %2632 = vmatpush1.msra.mxu0 0.0
    %2633 = vmatprep.subr.mxu0 0.0
    %2634 = vmatpush1.msra.mxu0 0.0
    %2635 = vmatprep.subr.mxu0 0.0
    %2636 = vmatpush1.msra.mxu0 0.0
    %2637 = vmatprep.subr.mxu0 0.0
    %2638 = vmatpush1.msra.mxu0 0.0
    %2639 = vmatprep.subr.mxu0 0.0
    %2640 = vmatpush1.msra.mxu0 0.0
    %2641 = vmatprep.subr.mxu0 0.0
    %2642 = vmatpush1.msra.mxu0 0.0
    %2643 = vmatprep.subr.mxu0 0.0
    %2644 = vmatpush1.msra.mxu0 0.0
    %2645 = vmatprep.subr.mxu0 0.0
    %2646 = vmatpush1.msra.mxu0 0.0
    %2647 = vmatprep.subr.mxu0 0.0
    %2648 = vmatpush1.msra.mxu0 0.0
    %2649 = vmatprep.subr.mxu0 0.0
    %2650 = vmatpush1.msra.mxu0 0.0
    %2651 = vmatprep.subr.mxu0 0.0
    %2652 = vmatpush1.msra.mxu0 0.0
    %2653 = vmatprep.subr.mxu0 0.0
    %2654 = vmatpush1.msra.mxu0 0.0
    %2655 = vmatprep.subr.mxu0 0.0
    %2656 = vmatpush1.msra.mxu0 0.0
    %2657 = vmatprep.subr.mxu0 0.0
    %2658 = vmatpush1.msra.mxu0 0.0
    %2659 = vmatprep.mubr.f32.mxu0 0.0
    %v2660 = vand.u32 %v2316, 4294901760
    %v2661 = vsub.f32 %v2316, %v2660
    %2662 = vmatmul.mubr.f32.gmra.mrb[0].mxu0 %v2661
    %v2663 = vpop.f32.mrb[0].mxu0
    %v2664 = vadd.f32 %v2560, %v2663
    %v2665 = vpop.f32.mrb[0].mxu0
    %2666 = vdwg.mxu0
    %2667 = vmatprep.subr.mxu0 0.0
    %v2668 = vand.u32 %v50, 4294901760
    %2669 = vmatpush1.msra.mxu0 %v2668
    %2670 = vmatprep.subr.mxu0 0.0
    %v2671 = vand.u32 %v54, 4294901760
    %2672 = vmatpush1.msra.mxu0 %v2671
    %2673 = vmatprep.subr.mxu0 0.0
    %v2674 = vand.u32 %v58, 4294901760
    %2675 = vmatpush1.msra.mxu0 %v2674
    %2676 = vmatprep.subr.mxu0 0.0
    %v2677 = vand.u32 %v62, 4294901760
    %2678 = vmatpush1.msra.mxu0 %v2677
    %2679 = vmatprep.subr.mxu0 0.0
    %v2680 = vand.u32 %v66, 4294901760
    %2681 = vmatpush1.msra.mxu0 %v2680
    %2682 = vmatprep.subr.mxu0 0.0
    %v2683 = vand.u32 %v70, 4294901760
    %2684 = vmatpush1.msra.mxu0 %v2683
    %2685 = vmatprep.subr.mxu0 0.0
    %v2686 = vand.u32 %v74, 4294901760
    %2687 = vmatpush1.msra.mxu0 %v2686
    %2688 = vmatprep.subr.mxu0 0.0
    %v2689 = vand.u32 %v78, 4294901760
    %2690 = vmatpush1.msra.mxu0 %v2689
    %2691 = vmatprep.subr.mxu0 0.0
    %v2692 = vand.u32 %v82, 4294901760
    %2693 = vmatpush1.msra.mxu0 %v2692
    %2694 = vmatprep.subr.mxu0 0.0
    %v2695 = vand.u32 %v86, 4294901760
    %2696 = vmatpush1.msra.mxu0 %v2695
    %2697 = vmatprep.subr.mxu0 0.0
    %v2698 = vand.u32 %v90, 4294901760
    %2699 = vmatpush1.msra.mxu0 %v2698
    %2700 = vmatprep.subr.mxu0 0.0
    %v2701 = vand.u32 %v94, 4294901760
    %2702 = vmatpush1.msra.mxu0 %v2701
    %2703 = vmatprep.subr.mxu0 0.0
    %v2704 = vand.u32 %v98, 4294901760
    %2705 = vmatpush1.msra.mxu0 %v2704
    %2706 = vmatprep.subr.mxu0 0.0
    %v2707 = vand.u32 %v102, 4294901760
    %2708 = vmatpush1.msra.mxu0 %v2707
    %2709 = vmatprep.subr.mxu0 0.0
    %v2710 = vand.u32 %v106, 4294901760
    %2711 = vmatpush1.msra.mxu0 %v2710
    %2712 = vmatprep.subr.mxu0 0.0
    %v2713 = vand.u32 %v110, 4294901760
    %2714 = vmatpush1.msra.mxu0 %v2713
    %2715 = vmatprep.subr.mxu0 0.0
    %2716 = vmatpush1.msra.mxu0 0.0
    %2717 = vmatprep.subr.mxu0 0.0
    %2718 = vmatpush1.msra.mxu0 0.0
    %2719 = vmatprep.subr.mxu0 0.0
    %2720 = vmatpush1.msra.mxu0 0.0
    %2721 = vmatprep.subr.mxu0 0.0
    %2722 = vmatpush1.msra.mxu0 0.0
    %2723 = vmatprep.subr.mxu0 0.0
    %2724 = vmatpush1.msra.mxu0 0.0
    %2725 = vmatprep.subr.mxu0 0.0
    %2726 = vmatpush1.msra.mxu0 0.0
    %2727 = vmatprep.subr.mxu0 0.0
    %2728 = vmatpush1.msra.mxu0 0.0
    %2729 = vmatprep.subr.mxu0 0.0
    %2730 = vmatpush1.msra.mxu0 0.0
    %2731 = vmatprep.subr.mxu0 0.0
    %2732 = vmatpush1.msra.mxu0 0.0
    %2733 = vmatprep.subr.mxu0 0.0
    %2734 = vmatpush1.msra.mxu0 0.0
    %2735 = vmatprep.subr.mxu0 0.0
    %2736 = vmatpush1.msra.mxu0 0.0
    %2737 = vmatprep.subr.mxu0 0.0
    %2738 = vmatpush1.msra.mxu0 0.0
    %2739 = vmatprep.subr.mxu0 0.0
    %2740 = vmatpush1.msra.mxu0 0.0
    %2741 = vmatprep.subr.mxu0 0.0
    %2742 = vmatpush1.msra.mxu0 0.0
    %2743 = vmatprep.subr.mxu0 0.0
    %2744 = vmatpush1.msra.mxu0 0.0
    %2745 = vmatprep.subr.mxu0 0.0
    %2746 = vmatpush1.msra.mxu0 0.0
    %2747 = vmatprep.mubr.f32.mxu0 0.0
    %v2748 = vand.u32 %v2316, 4294901760
    %v2749 = vsub.f32 %v2316, %v2748
    %v2750 = vand.u32 %v2749, 4294901760
    %2751 = vmatmul.mubr.f32.gmra.mrb[0].mxu0 %v2750
    %v2752 = vpop.f32.mrb[0].mxu0
    %v2753 = vadd.f32 %v2664, %v2752
    %v2754 = vpop.f32.mrb[0].mxu0
    %2755 = vdwg.mxu0
    %2756 = vmatprep.subr.mxu0 0.0
    %v2757 = vand.u32 %v50, 4294901760
    %v2758 = vsub.f32 %v50, %v2757
    %v2759 = vand.u32 %v2758, 4294901760
    %2760 = vmatpush1.msra.mxu0 %v2759
    %2761 = vmatprep.subr.mxu0 0.0
    %v2762 = vand.u32 %v54, 4294901760
    %v2763 = vsub.f32 %v54, %v2762
    %v2764 = vand.u32 %v2763, 4294901760
    %2765 = vmatpush1.msra.mxu0 %v2764
    %2766 = vmatprep.subr.mxu0 0.0
    %v2767 = vand.u32 %v58, 4294901760
    %v2768 = vsub.f32 %v58, %v2767
    %v2769 = vand.u32 %v2768, 4294901760
    %2770 = vmatpush1.msra.mxu0 %v2769
    %2771 = vmatprep.subr.mxu0 0.0
    %v2772 = vand.u32 %v62, 4294901760
    %v2773 = vsub.f32 %v62, %v2772
    %v2774 = vand.u32 %v2773, 4294901760
    %2775 = vmatpush1.msra.mxu0 %v2774
    %2776 = vmatprep.subr.mxu0 0.0
    %v2777 = vand.u32 %v66, 4294901760
    %v2778 = vsub.f32 %v66, %v2777
    %v2779 = vand.u32 %v2778, 4294901760
    %2780 = vmatpush1.msra.mxu0 %v2779
    %2781 = vmatprep.subr.mxu0 0.0
    %v2782 = vand.u32 %v70, 4294901760
    %v2783 = vsub.f32 %v70, %v2782
    %v2784 = vand.u32 %v2783, 4294901760
    %2785 = vmatpush1.msra.mxu0 %v2784
    %2786 = vmatprep.subr.mxu0 0.0
    %v2787 = vand.u32 %v74, 4294901760
    %v2788 = vsub.f32 %v74, %v2787
    %v2789 = vand.u32 %v2788, 4294901760
    %2790 = vmatpush1.msra.mxu0 %v2789
    %2791 = vmatprep.subr.mxu0 0.0
    %v2792 = vand.u32 %v78, 4294901760
    %v2793 = vsub.f32 %v78, %v2792
    %v2794 = vand.u32 %v2793, 4294901760
    %2795 = vmatpush1.msra.mxu0 %v2794
    %2796 = vmatprep.subr.mxu0 0.0
    %v2797 = vand.u32 %v82, 4294901760
    %v2798 = vsub.f32 %v82, %v2797
    %v2799 = vand.u32 %v2798, 4294901760
    %2800 = vmatpush1.msra.mxu0 %v2799
    %2801 = vmatprep.subr.mxu0 0.0
    %v2802 = vand.u32 %v86, 4294901760
    %v2803 = vsub.f32 %v86, %v2802
    %v2804 = vand.u32 %v2803, 4294901760
    %2805 = vmatpush1.msra.mxu0 %v2804
    %2806 = vmatprep.subr.mxu0 0.0
    %v2807 = vand.u32 %v90, 4294901760
    %v2808 = vsub.f32 %v90, %v2807
    %v2809 = vand.u32 %v2808, 4294901760
    %2810 = vmatpush1.msra.mxu0 %v2809
    %2811 = vmatprep.subr.mxu0 0.0
    %v2812 = vand.u32 %v94, 4294901760
    %v2813 = vsub.f32 %v94, %v2812
    %v2814 = vand.u32 %v2813, 4294901760
    %2815 = vmatpush1.msra.mxu0 %v2814
    %2816 = vmatprep.subr.mxu0 0.0
    %v2817 = vand.u32 %v98, 4294901760
    %v2818 = vsub.f32 %v98, %v2817
    %v2819 = vand.u32 %v2818, 4294901760
    %2820 = vmatpush1.msra.mxu0 %v2819
    %2821 = vmatprep.subr.mxu0 0.0
    %v2822 = vand.u32 %v102, 4294901760
    %v2823 = vsub.f32 %v102, %v2822
    %v2824 = vand.u32 %v2823, 4294901760
    %2825 = vmatpush1.msra.mxu0 %v2824
    %2826 = vmatprep.subr.mxu0 0.0
    %v2827 = vand.u32 %v106, 4294901760
    %v2828 = vsub.f32 %v106, %v2827
    %v2829 = vand.u32 %v2828, 4294901760
    %2830 = vmatpush1.msra.mxu0 %v2829
    %2831 = vmatprep.subr.mxu0 0.0
    %v2832 = vand.u32 %v110, 4294901760
    %v2833 = vsub.f32 %v110, %v2832
    %v2834 = vand.u32 %v2833, 4294901760
    %2835 = vmatpush1.msra.mxu0 %v2834
    %2836 = vmatprep.subr.mxu0 0.0
    %2837 = vmatpush1.msra.mxu0 0.0
    %2838 = vmatprep.subr.mxu0 0.0
    %2839 = vmatpush1.msra.mxu0 0.0
    %2840 = vmatprep.subr.mxu0 0.0
    %2841 = vmatpush1.msra.mxu0 0.0
    %2842 = vmatprep.subr.mxu0 0.0
    %2843 = vmatpush1.msra.mxu0 0.0
    %2844 = vmatprep.subr.mxu0 0.0
    %2845 = vmatpush1.msra.mxu0 0.0
    %2846 = vmatprep.subr.mxu0 0.0
    %2847 = vmatpush1.msra.mxu0 0.0
    %2848 = vmatprep.subr.mxu0 0.0
    %2849 = vmatpush1.msra.mxu0 0.0
    %2850 = vmatprep.subr.mxu0 0.0
    %2851 = vmatpush1.msra.mxu0 0.0
    %2852 = vmatprep.subr.mxu0 0.0
    %2853 = vmatpush1.msra.mxu0 0.0
    %2854 = vmatprep.subr.mxu0 0.0
    %2855 = vmatpush1.msra.mxu0 0.0
    %2856 = vmatprep.subr.mxu0 0.0
    %2857 = vmatpush1.msra.mxu0 0.0
    %2858 = vmatprep.subr.mxu0 0.0
    %2859 = vmatpush1.msra.mxu0 0.0
    %2860 = vmatprep.subr.mxu0 0.0
    %2861 = vmatpush1.msra.mxu0 0.0
    %2862 = vmatprep.subr.mxu0 0.0
    %2863 = vmatpush1.msra.mxu0 0.0
    %2864 = vmatprep.subr.mxu0 0.0
    %2865 = vmatpush1.msra.mxu0 0.0
    %2866 = vmatprep.subr.mxu0 0.0
    %2867 = vmatpush1.msra.mxu0 0.0
    %2868 = vmatprep.mubr.f32.mxu0 0.0
    %v2869 = vand.u32 %v2316, 4294901760
    %2870 = vmatmul.mubr.f32.gmra.mrb[0].mxu0 %v2869
    %v2871 = vpop.f32.mrb[0].mxu0
    %v2872 = vadd.f32 %v2753, %v2871
    %v2873 = vpop.f32.mrb[0].mxu0
    %2874 = vdwg.mxu0
    %2875 = vmatprep.subr.mxu0 0.0
    %v2876 = vand.u32 %v50, 4294901760
    %2877 = vmatpush1.msra.mxu0 %v2876
    %2878 = vmatprep.subr.mxu0 0.0
    %v2879 = vand.u32 %v54, 4294901760
    %2880 = vmatpush1.msra.mxu0 %v2879
    %2881 = vmatprep.subr.mxu0 0.0
    %v2882 = vand.u32 %v58, 4294901760
    %2883 = vmatpush1.msra.mxu0 %v2882
    %2884 = vmatprep.subr.mxu0 0.0
    %v2885 = vand.u32 %v62, 4294901760
    %2886 = vmatpush1.msra.mxu0 %v2885
    %2887 = vmatprep.subr.mxu0 0.0
    %v2888 = vand.u32 %v66, 4294901760
    %2889 = vmatpush1.msra.mxu0 %v2888
    %2890 = vmatprep.subr.mxu0 0.0
    %v2891 = vand.u32 %v70, 4294901760
    %2892 = vmatpush1.msra.mxu0 %v2891
    %2893 = vmatprep.subr.mxu0 0.0
    %v2894 = vand.u32 %v74, 4294901760
    %2895 = vmatpush1.msra.mxu0 %v2894
    %2896 = vmatprep.subr.mxu0 0.0
    %v2897 = vand.u32 %v78, 4294901760
    %2898 = vmatpush1.msra.mxu0 %v2897
    %2899 = vmatprep.subr.mxu0 0.0
    %v2900 = vand.u32 %v82, 4294901760
    %2901 = vmatpush1.msra.mxu0 %v2900
    %2902 = vmatprep.subr.mxu0 0.0
    %v2903 = vand.u32 %v86, 4294901760
    %2904 = vmatpush1.msra.mxu0 %v2903
    %2905 = vmatprep.subr.mxu0 0.0
    %v2906 = vand.u32 %v90, 4294901760
    %2907 = vmatpush1.msra.mxu0 %v2906
    %2908 = vmatprep.subr.mxu0 0.0
    %v2909 = vand.u32 %v94, 4294901760
    %2910 = vmatpush1.msra.mxu0 %v2909
    %2911 = vmatprep.subr.mxu0 0.0
    %v2912 = vand.u32 %v98, 4294901760
    %2913 = vmatpush1.msra.mxu0 %v2912
    %2914 = vmatprep.subr.mxu0 0.0
    %v2915 = vand.u32 %v102, 4294901760
    %2916 = vmatpush1.msra.mxu0 %v2915
    %2917 = vmatprep.subr.mxu0 0.0
    %v2918 = vand.u32 %v106, 4294901760
    %2919 = vmatpush1.msra.mxu0 %v2918
    %2920 = vmatprep.subr.mxu0 0.0
    %v2921 = vand.u32 %v110, 4294901760
    %2922 = vmatpush1.msra.mxu0 %v2921
    %2923 = vmatprep.subr.mxu0 0.0
    %2924 = vmatpush1.msra.mxu0 0.0
    %2925 = vmatprep.subr.mxu0 0.0
    %2926 = vmatpush1.msra.mxu0 0.0
    %2927 = vmatprep.subr.mxu0 0.0
    %2928 = vmatpush1.msra.mxu0 0.0
    %2929 = vmatprep.subr.mxu0 0.0
    %2930 = vmatpush1.msra.mxu0 0.0
    %2931 = vmatprep.subr.mxu0 0.0
    %2932 = vmatpush1.msra.mxu0 0.0
    %2933 = vmatprep.subr.mxu0 0.0
    %2934 = vmatpush1.msra.mxu0 0.0
    %2935 = vmatprep.subr.mxu0 0.0
    %2936 = vmatpush1.msra.mxu0 0.0
    %2937 = vmatprep.subr.mxu0 0.0
    %2938 = vmatpush1.msra.mxu0 0.0
    %2939 = vmatprep.subr.mxu0 0.0
    %2940 = vmatpush1.msra.mxu0 0.0
    %2941 = vmatprep.subr.mxu0 0.0
    %2942 = vmatpush1.msra.mxu0 0.0
    %2943 = vmatprep.subr.mxu0 0.0
    %2944 = vmatpush1.msra.mxu0 0.0
    %2945 = vmatprep.subr.mxu0 0.0
    %2946 = vmatpush1.msra.mxu0 0.0
    %2947 = vmatprep.subr.mxu0 0.0
    %2948 = vmatpush1.msra.mxu0 0.0
    %2949 = vmatprep.subr.mxu0 0.0
    %2950 = vmatpush1.msra.mxu0 0.0
    %2951 = vmatprep.subr.mxu0 0.0
    %2952 = vmatpush1.msra.mxu0 0.0
    %2953 = vmatprep.subr.mxu0 0.0
    %2954 = vmatpush1.msra.mxu0 0.0
    %2955 = vmatprep.mubr.f32.mxu0 0.0
    %v2956 = vand.u32 %v2316, 4294901760
    %2957 = vmatmul.mubr.f32.gmra.mrb[0].mxu0 %v2956
    %v2958 = vpop.f32.mrb[0].mxu0
    %v2959 = vadd.f32 %v2872, %v2958
    %v2960 = vpop.f32.mrb[0].mxu0
    %2961 = vdwg.mxu0
    %2962 = vst [vmem:[#allocation7] sm:$0xff] %v2959
    // Predicated region
    $region22: #{tpu_custom_call.1} parent=1 // pred_check
      _
    $region23: #{tpu_custom_call.1} parent=1 // pred_check_branch
      %2964 = sbr.rel (0) target = $region25
    $region24: #{tpu_custom_call.1} parent=1 // pred_region
      %s2966 = ssub.s32 128, 128
      %2967 = vsyncadd [#allocation4], %s2966
      %s2969 = sshll.u32 [#allocation7], 4
      %s2970 = int_to_ptr.vmem [resolvable:$true] %s2969
      %2972 = dma.vmem_to_hbm [thread:$0]  %s2970, 128, %s3, [#allocation4]
    $region25: #{tpu_custom_call.1} parent=1 // pred_fallthru
      _
    // Predicated region
    $region26: #{tpu_custom_call.1} parent=1 // pred_check
      _
    $region27: #{tpu_custom_call.1} parent=1 // pred_check_branch
      %2974 = sbr.rel (0) target = $region29
    $region28: #{tpu_custom_call.1} parent=1 // pred_region
      %2975 = dma.done [#allocation4], 128
    $region29: #{tpu_custom_call.1} parent=1 // pred_fallthru
      _
    %2976 = vsyncpa [#allocation3], 1
    %2977 = vsyncpa [#allocation6], 1
    %2978 = vsyncpa [#allocation4], 1

</llo_original>
